<compile_context>
chip_gen: v7x
topology: tpu7x:2x2x1
jax: 0.10.0
libtpu: 0.0.40
codegen_flags: <defaults>
</compile_context>

<pallas_src>
import functools
import math

import jax
import jax.numpy as jnp
from jax import lax
from jax.experimental import pallas as pl
from jax.experimental.pallas import tpu as pltpu


def av_attention_kernel(img_ref, text_ref, wq_ref, wk_ref, wv_ref,
                        bq_ref, bk_ref, bv_ref, out_ref, feat_ref,
                        *, scale, use_bf16_mxu, approx_recip):
    Bt, Nq, D = img_ref.shape
    _, Nt, _ = text_ref.shape
    dk = wq_ref.shape[1]
    dv = wv_ref.shape[1]

    img = img_ref[...]          # (Bt, Nq, D)
    text = text_ref[...]        # (Bt, Nt, D)

    # --- Projections: one big (Bt*N, D) @ (D, d) panel per weight so the MXU
    #     sees block_b*N rows at once.  Reshapes only touch leading dims
    #     (layout-preserving when Nq/Nt are sublane multiples). ---
    img2 = img.reshape(Bt * Nq, D)
    text2 = text.reshape(Bt * Nt, D)
    if use_bf16_mxu:
        img2 = img2.astype(jnp.bfloat16)
        text2 = text2.astype(jnp.bfloat16)
    # Weights arrive already in the MXU operand dtype (bf16 when
    # use_bf16_mxu) -> no per-step casts, half the weight DMA.
    wq = wq_ref[...]
    wk = wk_ref[...]
    wv = wv_ref[...]

    q = jnp.dot(img2, wq, preferred_element_type=jnp.float32) + bq_ref[...]
    k = jnp.dot(text2, wk, preferred_element_type=jnp.float32) + bk_ref[...]
    v = jnp.dot(text2, wv, preferred_element_type=jnp.float32) + bv_ref[...]

    q = q.reshape(Bt, Nq, dk)
    k = k.reshape(Bt, Nt, dk)
    v = v.reshape(Bt, Nt, dv)

    # --- scores = Q @ K^T, contracted over dk directly (no K transpose). ---
    qm = q.astype(jnp.bfloat16) if use_bf16_mxu else q
    km = k.astype(jnp.bfloat16) if use_bf16_mxu else k
    scores = lax.dot_general(
        qm, km,
        dimension_numbers=(((2,), (2,)), ((0,), (0,))),
        preferred_element_type=jnp.float32)          # (Bt, Nq, Nt)

    # --- softmax over keys (dim=-1), then * 1/sqrt(dk) POST-softmax,
    #     exactly as the PyTorch module does. ---
    m = jnp.max(scores, axis=-1, keepdims=True)
    e = jnp.exp(scores - m)
    denom = jnp.sum(e, axis=-1, keepdims=True)
    atten = e * (pl.reciprocal(denom, approx=approx_recip) * scale)

    # --- output = atten @ V (batched, transpose-free). ---
    attm = atten.astype(jnp.bfloat16) if use_bf16_mxu else atten
    vm = v.astype(jnp.bfloat16) if use_bf16_mxu else v
    out = lax.dot_general(
        attm, vm,
        dimension_numbers=(((2,), (1,)), ((0,), (0,))),
        preferred_element_type=jnp.float32)          # (Bt, Nq, dv)

    out_ref[...] = out.astype(out_ref.dtype)
    feat_ref[...] = (out + text.astype(jnp.float32)).astype(feat_ref.dtype)


def _vmem_budget_bytes():
    """Generation-aware VMEM budget: ~80% of physical per-core VMEM.

    ~51 MiB on v7x (64 MiB physical), ~102 MiB on v5e/v6e (128 MiB physical).
    Falls back to the smallest generation (v7x) if the query is unavailable.
    """
    try:
        cap = int(pltpu.get_tpu_info().vmem_capacity_bytes)
    except Exception:
        cap = 64 * 1024 * 1024
    return int(cap * 0.8)


def _per_step_vmem_bytes(block_b, Nq, Nt, D, dk, dv, in_b, out_b, w_b):
    """Conservative per-grid-step VMEM footprint estimate (bytes)."""
    # Pipelined (double-buffered) input / output blocks.
    io = 2 * block_b * (Nq * D + Nt * D) * in_b
    io += 2 * 2 * block_b * Nq * dv * out_b
    # Weights + biases; assume double-buffered (worst case, single-buffer is
    # only an optimization applied if the jax version supports Buffered(1)).
    wb = 2 * (D * (2 * dk + dv) * w_b + (2 * dk + dv) * 4)
    # In-kernel f32 temporaries: q/k/v, scores + exp, f32 out.
    tmp = block_b * (Nq * dk + Nt * dk + Nt * dv) * 4
    tmp += 2 * block_b * Nq * Nt * 4
    tmp += block_b * Nq * dv * 4
    # bf16 operand copies when running the MXU in bf16.
    if w_b == 2:
        tmp += block_b * (Nq * D + Nt * D + Nq * dk + Nt * dk
                          + Nt * dv + Nq * Nt) * 2
    return io + wb + tmp


def _pick_block_b(B, Nq, budget, footprint_fn, target_rows=512):
    """Largest divisor of B whose per-step footprint fits the VMEM budget.

    Only prefer a smaller block (>= 2 grid steps, for megacore / v7x's 2 TCs)
    when that smaller block already fills the MXU rows (block_b*Nq >=
    target_rows); on 1-TC chips fewer, bigger steps win.
    """
    divisors = [d for d in range(1, B + 1) if B % d == 0]
    fit = [d for d in divisors if footprint_fn(d) <= budget]
    if not fit:
        return 1
    block_b = fit[-1]
    for d in fit:
        if d * Nq >= target_rows and B // d >= 2:
            block_b = d
            break
    return block_b


def av_attention(img, text, wq, bq, wk, bk, wv, bv, *,
                 block_b=None, use_bf16_mxu=True, approx_recip=False):
    """img: (B, Nq, D); text: (B, Nt, D); w*: (D, d*) pre-transposed; b*: (d*,)."""
    B, Nq, D = img.shape
    _, Nt, Dt = text.shape
    dk = wq.shape[1]
    dv = wv.shape[1]
    assert Dt == D
    assert wk.shape == (D, dk) and wv.shape == (D, dv)
    assert bq.shape == (dk,) and bk.shape == (dk,) and bv.shape == (dv,)
    # feature = output + text requires matching shapes:
    assert Nq == Nt and dv == D

    # Cast weights ONCE outside the kernel (halves weight DMA / VMEM when
    # running the MXU in bf16; f32 accumulation everywhere).
    w_dtype = jnp.bfloat16 if use_bf16_mxu else img.dtype
    wq_c = wq.astype(w_dtype)
    wk_c = wk.astype(w_dtype)
    wv_c = wv.astype(w_dtype)

    in_b = jnp.dtype(img.dtype).itemsize
    out_b = in_b
    w_b = jnp.dtype(w_dtype).itemsize

    budget = _vmem_budget_bytes()
    if block_b is None:
        block_b = _pick_block_b(
            B, Nq, budget,
            lambda d: _per_step_vmem_bytes(d, Nq, Nt, D, dk, dv,
                                           in_b, out_b, w_b))
    assert B % block_b == 0
    grid = (B // block_b,)

    scale = 1.0 / math.sqrt(dk)

    # Biases as (1, d) f32 rows -> ordinary 2-D VMEM tiles, broadcast on add.
    bq2 = bq.reshape(1, dk).astype(jnp.float32)
    bk2 = bk.reshape(1, dk).astype(jnp.float32)
    bv2 = bv.reshape(1, dv).astype(jnp.float32)

    kernel = functools.partial(
        av_attention_kernel, scale=scale, use_bf16_mxu=use_bf16_mxu,
        approx_recip=approx_recip)

    out_shape = (
        jax.ShapeDtypeStruct((B, Nq, dv), img.dtype),   # output
        jax.ShapeDtypeStruct((B, Nq, dv), img.dtype),   # feature
    )

    # Advisory cost estimate so XLA schedules around the custom call.
    flops = 2 * B * (Nq * D * dk + Nt * D * dk + Nt * D * dv
                     + Nq * Nt * dk + Nq * Nt * dv)
    bytes_accessed = (B * (Nq * D + Nt * D) * in_b
                      + D * (2 * dk + dv) * w_b + (2 * dk + dv) * 4
                      + 2 * B * Nq * dv * out_b)
    cost = pl.CostEstimate(flops=flops, transcendentals=B * Nq * Nt,
                           bytes_accessed=bytes_accessed)

    def build(single_buffer_consts):
        def const_spec(shape):
            idx_map = lambda b: (0,) * len(shape)
            if single_buffer_consts:
                # Constant-index blocks don't need a second pipeline buffer.
                return pl.BlockSpec(shape, idx_map,
                                    pipeline_mode=pl.Buffered(1))
            return pl.BlockSpec(shape, idx_map)

        return pl.pallas_call(
            kernel,
            out_shape=out_shape,
            grid_spec=pltpu.PrefetchScalarGridSpec(
                num_scalar_prefetch=0,
                grid=grid,
                in_specs=[
                    pl.BlockSpec((block_b, Nq, D), lambda b: (b, 0, 0)),  # img
                    pl.BlockSpec((block_b, Nt, D), lambda b: (b, 0, 0)),  # text
                    const_spec((D, dk)),                                   # Wq^T
                    const_spec((D, dk)),                                   # Wk^T
                    const_spec((D, dv)),                                   # Wv^T
                    const_spec((1, dk)),                                   # bq
                    const_spec((1, dk)),                                   # bk
                    const_spec((1, dv)),                                   # bv
                ],
                out_specs=[
                    pl.BlockSpec((block_b, Nq, dv), lambda b: (b, 0, 0)),
                    pl.BlockSpec((block_b, Nq, dv), lambda b: (b, 0, 0)),
                ],
            ),
            compiler_params=pltpu.CompilerParams(
                dimension_semantics=("parallel",),
                vmem_limit_bytes=int(budget),
            ),
            cost_estimate=cost,
        )

    args = (img, text, wq_c, wk_c, wv_c, bq2, bk2, bv2)
    try:
        return build(single_buffer_consts=True)(*args)
    except Exception:
        # pipeline_mode=pl.Buffered(1) not supported on this jax version:
        # fall back to default double-buffered constant blocks.
        return build(single_buffer_consts=False)(*args)


def reference(img, text, wq, bq, wk, bk, wv, bv):
    """Pure-JAX reference mirroring the PyTorch forward."""
    dk = wq.shape[1]
    q = img @ wq + bq
    k = text @ wk + bk
    v = text @ wv + bv
    scores = jnp.einsum("bqd,bkd->bqk", q, k)
    atten = jax.nn.softmax(scores, axis=-1) * (1.0 / math.sqrt(dk))
    out = jnp.einsum("bqk,bkv->bqv", atten, v)
    return out, out + text


if __name__ == "__main__":
    # Small shapes consistent with the module: input_dim == dim_v, Nq == Nt.
    B, N, input_dim, dim_k, dim_v = 4, 8, 32, 16, 32

    key = jax.random.PRNGKey(0)
    ks = jax.random.split(key, 8)

    img = jax.random.normal(ks[0], (B, N, input_dim), dtype=jnp.float32)
    text = jax.random.normal(ks[1], (B, N, input_dim), dtype=jnp.float32)

    # nn.Linear(input_dim, d) weight is (d, input_dim); store it transposed.
    bound = 1.0 / (input_dim ** 0.5)
    wq = jax.random.uniform(ks[2], (input_dim, dim_k), jnp.float32, -bound, bound)
    wk = jax.random.uniform(ks[3], (input_dim, dim_k), jnp.float32, -bound, bound)
    wv = jax.random.uniform(ks[4], (input_dim, dim_v), jnp.float32, -bound, bound)
    bq = jax.random.uniform(ks[5], (dim_k,), jnp.float32, -bound, bound)
    bk = jax.random.uniform(ks[6], (dim_k,), jnp.float32, -bound, bound)
    bv = jax.random.uniform(ks[7], (dim_v,), jnp.float32, -bound, bound)

    out_ref, feat_ref = reference(img, text, wq, bq, wk, bk, wv, bv)

    # f32-MXU path (exact EUP reciprocal in the softmax).
    out, feat = av_attention(img, text, wq, bq, wk, bk, wv, bv,
                             use_bf16_mxu=False)
    jax.block_until_ready((out, feat))
    assert jnp.allclose(out, out_ref, atol=5e-3, rtol=5e-3)
    assert jnp.allclose(feat, feat_ref, atol=5e-3, rtol=5e-3)

    # bf16-MXU default fast path (f32 accumulation) -- looser tolerance.
    out_bf, feat_bf = av_attention(img, text, wq, bq, wk, bk, wv, bv)
    jax.block_until_ready((out_bf, feat_bf))
    assert jnp.allclose(out_bf, out_ref, atol=5e-2, rtol=5e-2)
    assert jnp.allclose(feat_bf, feat_ref, atol=5e-2, rtol=5e-2)

    print("KERNEL_OK")
</pallas_src>

<mosaic_0001>
module attributes {stable_mosaic.version = 11 : i64} {
  func.func @av_attention_kernel(%arg0: i32, %arg1: memref<4x8x32xf32, #tpu.memory_space<vmem>>, %arg2: memref<4x8x32xf32, #tpu.memory_space<vmem>>, %arg3: memref<32x16xf32, #tpu.memory_space<vmem>>, %arg4: memref<32x16xf32, #tpu.memory_space<vmem>>, %arg5: memref<32x32xf32, #tpu.memory_space<vmem>>, %arg6: memref<1x16xf32, #tpu.memory_space<vmem>>, %arg7: memref<1x16xf32, #tpu.memory_space<vmem>>, %arg8: memref<1x32xf32, #tpu.memory_space<vmem>>, %arg9: memref<4x8x32xf32, #tpu.memory_space<vmem>>, %arg10: memref<4x8x32xf32, #tpu.memory_space<vmem>>) attributes {dimension_semantics = [#tpu.dimension_semantics<parallel>], iteration_bounds = array<i64: 1>, scalar_prefetch = 0 : i64, scratch_operands = 0 : i64, tpu.core_type = #tpu.core_type<tc>, window_params = [{transform_indices = @transform_0, window_bounds = array<i64: 4, 8, 32>}, {transform_indices = @transform_1, window_bounds = array<i64: 4, 8, 32>}, {pipeline_mode = #tpu.pipeline_mode<synchronous>, transform_indices = @transform_2, window_bounds = array<i64: 32, 16>}, {pipeline_mode = #tpu.pipeline_mode<synchronous>, transform_indices = @transform_3, window_bounds = array<i64: 32, 16>}, {pipeline_mode = #tpu.pipeline_mode<synchronous>, transform_indices = @transform_4, window_bounds = array<i64: 32, 32>}, {pipeline_mode = #tpu.pipeline_mode<synchronous>, transform_indices = @transform_5, window_bounds = array<i64: 1, 16>}, {pipeline_mode = #tpu.pipeline_mode<synchronous>, transform_indices = @transform_6, window_bounds = array<i64: 1, 16>}, {pipeline_mode = #tpu.pipeline_mode<synchronous>, transform_indices = @transform_7, window_bounds = array<i64: 1, 32>}, {transform_indices = @transform_8, window_bounds = array<i64: 4, 8, 32>}, {transform_indices = @transform_9, window_bounds = array<i64: 4, 8, 32>}]} {
    %c0 = arith.constant 0 : index
    %c0_0 = arith.constant 0 : index
    %c0_1 = arith.constant 0 : index
    %0 = vector.load %arg1[%c0, %c0_0, %c0_1] : memref<4x8x32xf32, #tpu.memory_space<vmem>>, vector<4x8x32xf32>
    %c0_2 = arith.constant 0 : index
    %c0_3 = arith.constant 0 : index
    %c0_4 = arith.constant 0 : index
    %1 = vector.load %arg2[%c0_2, %c0_3, %c0_4] : memref<4x8x32xf32, #tpu.memory_space<vmem>>, vector<4x8x32xf32>
    %2 = vector.shape_cast %0 : vector<4x8x32xf32> to vector<32x32xf32>
    %3 = vector.shape_cast %1 : vector<4x8x32xf32> to vector<32x32xf32>
    %c0_5 = arith.constant 0 : index
    %c0_6 = arith.constant 0 : index
    %4 = vector.load %arg3[%c0_5, %c0_6] : memref<32x16xf32, #tpu.memory_space<vmem>>, vector<32x16xf32>
    %c0_7 = arith.constant 0 : index
    %c0_8 = arith.constant 0 : index
    %5 = vector.load %arg4[%c0_7, %c0_8] : memref<32x16xf32, #tpu.memory_space<vmem>>, vector<32x16xf32>
    %c0_9 = arith.constant 0 : index
    %c0_10 = arith.constant 0 : index
    %6 = vector.load %arg5[%c0_9, %c0_10] : memref<32x32xf32, #tpu.memory_space<vmem>>, vector<32x32xf32>
    %cst = arith.constant dense<0.000000e+00> : vector<32x16xf32>
    %7 = tpu.matmul %2, %4, %cst {dimension_numbers = #tpu.dot_dimension_numbers<[1], [0], [0], [1], [0, 0, 1, 1], [], []>} : vector<32x32xf32>, vector<32x16xf32>, vector<32x16xf32> -> vector<32x16xf32>
    %c0_11 = arith.constant 0 : index
    %c0_12 = arith.constant 0 : index
    %8 = vector.load %arg6[%c0_11, %c0_12] : memref<1x16xf32, #tpu.memory_space<vmem>>, vector<1x16xf32>
    %9 = vector.broadcast %8 : vector<1x16xf32> to vector<32x16xf32>
    %10 = arith.addf %7, %9 : vector<32x16xf32>
    %cst_13 = arith.constant dense<0.000000e+00> : vector<32x16xf32>
    %11 = tpu.matmul %3, %5, %cst_13 {dimension_numbers = #tpu.dot_dimension_numbers<[1], [0], [0], [1], [0, 0, 1, 1], [], []>} : vector<32x32xf32>, vector<32x16xf32>, vector<32x16xf32> -> vector<32x16xf32>
    %c0_14 = arith.constant 0 : index
    %c0_15 = arith.constant 0 : index
    %12 = vector.load %arg7[%c0_14, %c0_15] : memref<1x16xf32, #tpu.memory_space<vmem>>, vector<1x16xf32>
    %13 = vector.broadcast %12 : vector<1x16xf32> to vector<32x16xf32>
    %14 = arith.addf %11, %13 : vector<32x16xf32>
    %cst_16 = arith.constant dense<0.000000e+00> : vector<32x32xf32>
    %15 = tpu.matmul %3, %6, %cst_16 {dimension_numbers = #tpu.dot_dimension_numbers<[1], [0], [0], [1], [0, 0, 1, 1], [], []>} : vector<32x32xf32>, vector<32x32xf32>, vector<32x32xf32> -> vector<32x32xf32>
    %c0_17 = arith.constant 0 : index
    %c0_18 = arith.constant 0 : index
    %16 = vector.load %arg8[%c0_17, %c0_18] : memref<1x32xf32, #tpu.memory_space<vmem>>, vector<1x32xf32>
    %17 = vector.broadcast %16 : vector<1x32xf32> to vector<32x32xf32>
    %18 = arith.addf %15, %17 : vector<32x32xf32>
    %19 = vector.shape_cast %10 : vector<32x16xf32> to vector<4x8x16xf32>
    %20 = vector.shape_cast %14 : vector<32x16xf32> to vector<4x8x16xf32>
    %21 = vector.shape_cast %18 : vector<32x32xf32> to vector<4x8x32xf32>
    %cst_19 = arith.constant dense<0.000000e+00> : vector<4x8x8xf32>
    %22 = tpu.matmul %19, %20, %cst_19 {dimension_numbers = #tpu.dot_dimension_numbers<[2], [2], [1], [1], [0, 0, 0, 1, 1, 1], [0], [0]>} : vector<4x8x16xf32>, vector<4x8x16xf32>, vector<4x8x8xf32> -> vector<4x8x8xf32>
    %cst_20 = arith.constant dense<0xFF800000> : vector<4x8xf32>
    %23 = vector.multi_reduction <maximumf>, %22, %cst_20 [2] : vector<4x8x8xf32> to vector<4x8xf32>
    %24 = vector.shape_cast %23 : vector<4x8xf32> to vector<4x8x1xf32>
    %25 = vector.broadcast %24 : vector<4x8x1xf32> to vector<4x8x8xf32>
    %26 = arith.subf %22, %25 : vector<4x8x8xf32>
    %27 = math.exp %26 : vector<4x8x8xf32>
    %cst_21 = arith.constant dense<0.000000e+00> : vector<4x8xf32>
    %28 = vector.multi_reduction <add>, %27, %cst_21 [2] : vector<4x8x8xf32> to vector<4x8xf32>
    %29 = vector.shape_cast %28 : vector<4x8xf32> to vector<4x8x1xf32>
    %30 = tpu.reciprocal %29 : vector<4x8x1xf32> -> vector<4x8x1xf32>
    %cst_22 = arith.constant 2.500000e-01 : f32
    %31 = vector.broadcast %cst_22 : f32 to vector<4x8x1xf32>
    %32 = arith.mulf %30, %31 : vector<4x8x1xf32>
    %33 = vector.broadcast %32 : vector<4x8x1xf32> to vector<4x8x8xf32>
    %34 = arith.mulf %27, %33 : vector<4x8x8xf32>
    %cst_23 = arith.constant dense<0.000000e+00> : vector<4x8x32xf32>
    %35 = tpu.matmul %34, %21, %cst_23 {dimension_numbers = #tpu.dot_dimension_numbers<[2], [1], [1], [2], [0, 0, 0, 1, 1, 2], [0], [0]>} : vector<4x8x8xf32>, vector<4x8x32xf32>, vector<4x8x32xf32> -> vector<4x8x32xf32>
    %c0_24 = arith.constant 0 : index
    %c0_25 = arith.constant 0 : index
    %c0_26 = arith.constant 0 : index
    %36 = vector.load %arg9[%c0_24, %c0_25, %c0_26] : memref<4x8x32xf32, #tpu.memory_space<vmem>>, vector<4x8x32xf32>
    tpu.vector_store %arg9[%c0_24, %c0_25, %c0_26], %35 {strides = array<i32>} : memref<4x8x32xf32, #tpu.memory_space<vmem>>, vector<4x8x32xf32>,
    %37 = arith.addf %35, %1 : vector<4x8x32xf32>
    %c0_27 = arith.constant 0 : index
    %c0_28 = arith.constant 0 : index
    %c0_29 = arith.constant 0 : index
    %38 = vector.load %arg10[%c0_27, %c0_28, %c0_29] : memref<4x8x32xf32, #tpu.memory_space<vmem>>, vector<4x8x32xf32>
    tpu.vector_store %arg10[%c0_27, %c0_28, %c0_29], %37 {strides = array<i32>} : memref<4x8x32xf32, #tpu.memory_space<vmem>>, vector<4x8x32xf32>,
    return
  }
  func.func @transform_0(%arg0: i32) -> (i32, i32, i32) {
    %c0_i32 = arith.constant 0 : i32
    %c0_i32_0 = arith.constant 0 : i32
    %c0_i32_1 = arith.constant 0 : i32
    return %arg0, %c0_i32, %c0_i32_0 : i32, i32, i32
  }
  func.func @transform_1(%arg0: i32) -> (i32, i32, i32) {
    %c0_i32 = arith.constant 0 : i32
    %c0_i32_0 = arith.constant 0 : i32
    %c0_i32_1 = arith.constant 0 : i32
    return %arg0, %c0_i32, %c0_i32_0 : i32, i32, i32
  }
  func.func @transform_2(%arg0: i32) -> (i32, i32) {
    %c0_i32 = arith.constant 0 : i32
    %c0_i32_0 = arith.constant 0 : i32
    %c0_i32_1 = arith.constant 0 : i32
    return %c0_i32, %c0_i32_0 : i32, i32
  }
  func.func @transform_3(%arg0: i32) -> (i32, i32) {
    %c0_i32 = arith.constant 0 : i32
    %c0_i32_0 = arith.constant 0 : i32
    %c0_i32_1 = arith.constant 0 : i32
    return %c0_i32, %c0_i32_0 : i32, i32
  }
  func.func @transform_4(%arg0: i32) -> (i32, i32) {
    %c0_i32 = arith.constant 0 : i32
    %c0_i32_0 = arith.constant 0 : i32
    %c0_i32_1 = arith.constant 0 : i32
    return %c0_i32, %c0_i32_0 : i32, i32
  }
  func.func @transform_5(%arg0: i32) -> (i32, i32) {
    %c0_i32 = arith.constant 0 : i32
    %c0_i32_0 = arith.constant 0 : i32
    %c0_i32_1 = arith.constant 0 : i32
    return %c0_i32, %c0_i32_0 : i32, i32
  }
  func.func @transform_6(%arg0: i32) -> (i32, i32) {
    %c0_i32 = arith.constant 0 : i32
    %c0_i32_0 = arith.constant 0 : i32
    %c0_i32_1 = arith.constant 0 : i32
    return %c0_i32, %c0_i32_0 : i32, i32
  }
  func.func @transform_7(%arg0: i32) -> (i32, i32) {
    %c0_i32 = arith.constant 0 : i32
    %c0_i32_0 = arith.constant 0 : i32
    %c0_i32_1 = arith.constant 0 : i32
    return %c0_i32, %c0_i32_0 : i32, i32
  }
  func.func @transform_8(%arg0: i32) -> (i32, i32, i32) {
    %c0_i32 = arith.constant 0 : i32
    %c0_i32_0 = arith.constant 0 : i32
    %c0_i32_1 = arith.constant 0 : i32
    return %arg0, %c0_i32, %c0_i32_0 : i32, i32, i32
  }
  func.func @transform_9(%arg0: i32) -> (i32, i32, i32) {
    %c0_i32 = arith.constant 0 : i32
    %c0_i32_0 = arith.constant 0 : i32
    %c0_i32_1 = arith.constant 0 : i32
    return %arg0, %c0_i32, %c0_i32_0 : i32, i32, i32
  }
}

module attributes {stable_mosaic.version = 11 : i64} {
  func.func @av_attention_kernel(%arg0: i32, %arg1: memref<4x8x32xf32, #tpu.memory_space<vmem>>, %arg2: memref<4x8x32xf32, #tpu.memory_space<vmem>>, %arg3: memref<32x16xf32, #tpu.memory_space<vmem>>, %arg4: memref<32x16xf32, #tpu.memory_space<vmem>>, %arg5: memref<32x32xf32, #tpu.memory_space<vmem>>, %arg6: memref<1x16xf32, #tpu.memory_space<vmem>>, %arg7: memref<1x16xf32, #tpu.memory_space<vmem>>, %arg8: memref<1x32xf32, #tpu.memory_space<vmem>>, %arg9: memref<4x8x32xf32, #tpu.memory_space<vmem>>, %arg10: memref<4x8x32xf32, #tpu.memory_space<vmem>>) attributes {dimension_semantics = [#tpu.dimension_semantics<parallel>], iteration_bounds = array<i64: 1>, scalar_prefetch = 0 : i64, scratch_operands = 0 : i64, tpu.core_type = #tpu.core_type<tc>, window_params = [{transform_indices = @transform_0, window_bounds = array<i64: 4, 8, 32>}, {transform_indices = @transform_1, window_bounds = array<i64: 4, 8, 32>}, {pipeline_mode = #tpu.pipeline_mode<synchronous>, transform_indices = @transform_2, window_bounds = array<i64: 32, 16>}, {pipeline_mode = #tpu.pipeline_mode<synchronous>, transform_indices = @transform_3, window_bounds = array<i64: 32, 16>}, {pipeline_mode = #tpu.pipeline_mode<synchronous>, transform_indices = @transform_4, window_bounds = array<i64: 32, 32>}, {pipeline_mode = #tpu.pipeline_mode<synchronous>, transform_indices = @transform_5, window_bounds = array<i64: 1, 16>}, {pipeline_mode = #tpu.pipeline_mode<synchronous>, transform_indices = @transform_6, window_bounds = array<i64: 1, 16>}, {pipeline_mode = #tpu.pipeline_mode<synchronous>, transform_indices = @transform_7, window_bounds = array<i64: 1, 32>}, {transform_indices = @transform_8, window_bounds = array<i64: 4, 8, 32>}, {transform_indices = @transform_9, window_bounds = array<i64: 4, 8, 32>}]} {
    %c0 = arith.constant 0 : index
    %c0_0 = arith.constant 0 : index
    %c0_1 = arith.constant 0 : index
    %0 = vector.load %arg1[%c0, %c0_0, %c0_1] : memref<4x8x32xf32, #tpu.memory_space<vmem>>, vector<4x8x32xf32>
    %c0_2 = arith.constant 0 : index
    %c0_3 = arith.constant 0 : index
    %c0_4 = arith.constant 0 : index
    %1 = vector.load %arg2[%c0_2, %c0_3, %c0_4] : memref<4x8x32xf32, #tpu.memory_space<vmem>>, vector<4x8x32xf32>
    %2 = vector.shape_cast %0 : vector<4x8x32xf32> to vector<32x32xf32>
    %3 = vector.shape_cast %1 : vector<4x8x32xf32> to vector<32x32xf32>
    %c0_5 = arith.constant 0 : index
    %c0_6 = arith.constant 0 : index
    %4 = vector.load %arg3[%c0_5, %c0_6] : memref<32x16xf32, #tpu.memory_space<vmem>>, vector<32x16xf32>
    %c0_7 = arith.constant 0 : index
    %c0_8 = arith.constant 0 : index
    %5 = vector.load %arg4[%c0_7, %c0_8] : memref<32x16xf32, #tpu.memory_space<vmem>>, vector<32x16xf32>
    %c0_9 = arith.constant 0 : index
    %c0_10 = arith.constant 0 : index
    %6 = vector.load %arg5[%c0_9, %c0_10] : memref<32x32xf32, #tpu.memory_space<vmem>>, vector<32x32xf32>
    %cst = arith.constant dense<0.000000e+00> : vector<32x16xf32>
    %7 = tpu.matmul %2, %4, %cst {dimension_numbers = #tpu.dot_dimension_numbers<[1], [0], [0], [1], [0, 0, 1, 1], [], []>} : vector<32x32xf32>, vector<32x16xf32>, vector<32x16xf32> -> vector<32x16xf32>
    %c0_11 = arith.constant 0 : index
    %c0_12 = arith.constant 0 : index
    %8 = vector.load %arg6[%c0_11, %c0_12] : memref<1x16xf32, #tpu.memory_space<vmem>>, vector<1x16xf32>
    %9 = vector.broadcast %8 : vector<1x16xf32> to vector<32x16xf32>
    %10 = arith.addf %7, %9 : vector<32x16xf32>
    %cst_13 = arith.constant dense<0.000000e+00> : vector<32x16xf32>
    %11 = tpu.matmul %3, %5, %cst_13 {dimension_numbers = #tpu.dot_dimension_numbers<[1], [0], [0], [1], [0, 0, 1, 1], [], []>} : vector<32x32xf32>, vector<32x16xf32>, vector<32x16xf32> -> vector<32x16xf32>
    %c0_14 = arith.constant 0 : index
    %c0_15 = arith.constant 0 : index
    %12 = vector.load %arg7[%c0_14, %c0_15] : memref<1x16xf32, #tpu.memory_space<vmem>>, vector<1x16xf32>
    %13 = vector.broadcast %12 : vector<1x16xf32> to vector<32x16xf32>
    %14 = arith.addf %11, %13 : vector<32x16xf32>
    %cst_16 = arith.constant dense<0.000000e+00> : vector<32x32xf32>
    %15 = tpu.matmul %3, %6, %cst_16 {dimension_numbers = #tpu.dot_dimension_numbers<[1], [0], [0], [1], [0, 0, 1, 1], [], []>} : vector<32x32xf32>, vector<32x32xf32>, vector<32x32xf32> -> vector<32x32xf32>
    %c0_17 = arith.constant 0 : index
    %c0_18 = arith.constant 0 : index
    %16 = vector.load %arg8[%c0_17, %c0_18] : memref<1x32xf32, #tpu.memory_space<vmem>>, vector<1x32xf32>
    %17 = vector.broadcast %16 : vector<1x32xf32> to vector<32x32xf32>
    %18 = arith.addf %15, %17 : vector<32x32xf32>
    %19 = vector.shape_cast %10 : vector<32x16xf32> to vector<4x8x16xf32>
    %20 = vector.shape_cast %14 : vector<32x16xf32> to vector<4x8x16xf32>
    %21 = vector.shape_cast %18 : vector<32x32xf32> to vector<4x8x32xf32>
    %cst_19 = arith.constant dense<0.000000e+00> : vector<4x8x8xf32>
    %22 = tpu.matmul %19, %20, %cst_19 {dimension_numbers = #tpu.dot_dimension_numbers<[2], [2], [1], [1], [0, 0, 0, 1, 1, 1], [0], [0]>} : vector<4x8x16xf32>, vector<4x8x16xf32>, vector<4x8x8xf32> -> vector<4x8x8xf32>
    %cst_20 = arith.constant dense<0xFF800000> : vector<4x8xf32>
    %23 = vector.multi_reduction <maximumf>, %22, %cst_20 [2] : vector<4x8x8xf32> to vector<4x8xf32>
    %24 = vector.shape_cast %23 : vector<4x8xf32> to vector<4x8x1xf32>
    %25 = vector.broadcast %24 : vector<4x8x1xf32> to vector<4x8x8xf32>
    %26 = arith.subf %22, %25 : vector<4x8x8xf32>
    %27 = math.exp %26 : vector<4x8x8xf32>
    %cst_21 = arith.constant dense<0.000000e+00> : vector<4x8xf32>
    %28 = vector.multi_reduction <add>, %27, %cst_21 [2] : vector<4x8x8xf32> to vector<4x8xf32>
    %29 = vector.shape_cast %28 : vector<4x8xf32> to vector<4x8x1xf32>
    %30 = tpu.reciprocal %29 : vector<4x8x1xf32> -> vector<4x8x1xf32>
    %cst_22 = arith.constant 2.500000e-01 : f32
    %31 = vector.broadcast %cst_22 : f32 to vector<4x8x1xf32>
    %32 = arith.mulf %30, %31 : vector<4x8x1xf32>
    %33 = vector.broadcast %32 : vector<4x8x1xf32> to vector<4x8x8xf32>
    %34 = arith.mulf %27, %33 : vector<4x8x8xf32>
    %cst_23 = arith.constant dense<0.000000e+00> : vector<4x8x32xf32>
    %35 = tpu.matmul %34, %21, %cst_23 {dimension_numbers = #tpu.dot_dimension_numbers<[2], [1], [1], [2], [0, 0, 0, 1, 1, 2], [0], [0]>} : vector<4x8x8xf32>, vector<4x8x32xf32>, vector<4x8x32xf32> -> vector<4x8x32xf32>
    %c0_24 = arith.constant 0 : index
    %c0_25 = arith.constant 0 : index
    %c0_26 = arith.constant 0 : index
    %36 = vector.load %arg9[%c0_24, %c0_25, %c0_26] : memref<4x8x32xf32, #tpu.memory_space<vmem>>, vector<4x8x32xf32>
    tpu.vector_store %arg9[%c0_24, %c0_25, %c0_26], %35 {strides = array<i32>} : memref<4x8x32xf32, #tpu.memory_space<vmem>>, vector<4x8x32xf32>,
    %37 = arith.addf %35, %1 : vector<4x8x32xf32>
    %c0_27 = arith.constant 0 : index
    %c0_28 = arith.constant 0 : index
    %c0_29 = arith.constant 0 : index
    %38 = vector.load %arg10[%c0_27, %c0_28, %c0_29] : memref<4x8x32xf32, #tpu.memory_space<vmem>>, vector<4x8x32xf32>
    tpu.vector_store %arg10[%c0_27, %c0_28, %c0_29], %37 {strides = array<i32>} : memref<4x8x32xf32, #tpu.memory_space<vmem>>, vector<4x8x32xf32>,
    return
  }
  func.func @transform_0(%arg0: i32) -> (i32, i32, i32) {
    %c0_i32 = arith.constant 0 : i32
    %c0_i32_0 = arith.constant 0 : i32
    %c0_i32_1 = arith.constant 0 : i32
    return %arg0, %c0_i32, %c0_i32_0 : i32, i32, i32
  }
  func.func @transform_1(%arg0: i32) -> (i32, i32, i32) {
    %c0_i32 = arith.constant 0 : i32
    %c0_i32_0 = arith.constant 0 : i32
    %c0_i32_1 = arith.constant 0 : i32
    return %arg0, %c0_i32, %c0_i32_0 : i32, i32, i32
  }
  func.func @transform_2(%arg0: i32) -> (i32, i32) {
    %c0_i32 = arith.constant 0 : i32
    %c0_i32_0 = arith.constant 0 : i32
    %c0_i32_1 = arith.constant 0 : i32
    return %c0_i32, %c0_i32_0 : i32, i32
  }
  func.func @transform_3(%arg0: i32) -> (i32, i32) {
    %c0_i32 = arith.constant 0 : i32
    %c0_i32_0 = arith.constant 0 : i32
    %c0_i32_1 = arith.constant 0 : i32
    return %c0_i32, %c0_i32_0 : i32, i32
  }
  func.func @transform_4(%arg0: i32) -> (i32, i32) {
    %c0_i32 = arith.constant 0 : i32
    %c0_i32_0 = arith.constant 0 : i32
    %c0_i32_1 = arith.constant 0 : i32
    return %c0_i32, %c0_i32_0 : i32, i32
  }
  func.func @transform_5(%arg0: i32) -> (i32, i32) {
    %c0_i32 = arith.constant 0 : i32
    %c0_i32_0 = arith.constant 0 : i32
    %c0_i32_1 = arith.constant 0 : i32
    return %c0_i32, %c0_i32_0 : i32, i32
  }
  func.func @transform_6(%arg0: i32) -> (i32, i32) {
    %c0_i32 = arith.constant 0 : i32
    %c0_i32_0 = arith.constant 0 : i32
    %c0_i32_1 = arith.constant 0 : i32
    return %c0_i32, %c0_i32_0 : i32, i32
  }
  func.func @transform_7(%arg0: i32) -> (i32, i32) {
    %c0_i32 = arith.constant 0 : i32
    %c0_i32_0 = arith.constant 0 : i32
    %c0_i32_1 = arith.constant 0 : i32
    return %c0_i32, %c0_i32_0 : i32, i32
  }
  func.func @transform_8(%arg0: i32) -> (i32, i32, i32) {
    %c0_i32 = arith.constant 0 : i32
    %c0_i32_0 = arith.constant 0 : i32
    %c0_i32_1 = arith.constant 0 : i32
    return %arg0, %c0_i32, %c0_i32_0 : i32, i32, i32
  }
  func.func @transform_9(%arg0: i32) -> (i32, i32, i32) {
    %c0_i32 = arith.constant 0 : i32
    %c0_i32_0 = arith.constant 0 : i32
    %c0_i32_1 = arith.constant 0 : i32
    return %arg0, %c0_i32, %c0_i32_0 : i32, i32, i32
  }
}

</mosaic_0001>

<llo_original>
// kernel: tpu_custom_call.1
$region0: #{tpu_custom_call.1}
  #allocation0 [shape = 'u32[]', space=smem, size = 0x4, offset = 0x4, fixed_abs, tag = 'smem constant byte address 0x4 - core index']
  #allocation1 [shape = 'u32[144,128]{1,0:T(1,128)}', space=vmem, size = 0x12000, scoped, tag = 'internal scratch']
  %s0 = inlined_call_operand.vmem [shape: f32[4,8,32], index: 0, kind: input, shape index: {}]
  %s1 = inlined_call_operand.vmem [shape: f32[4,8,32], index: 1, kind: input, shape index: {}]
  %s2 = inlined_call_operand.vmem [shape: f32[32,16], index: 2, kind: input, shape index: {}]
  %s3 = inlined_call_operand.vmem [shape: f32[32,16], index: 3, kind: input, shape index: {}]
  %s4 = inlined_call_operand.vmem [shape: f32[32,32], index: 4, kind: input, shape index: {}]
  %s5 = inlined_call_operand.vmem [shape: f32[1,16], index: 5, kind: input, shape index: {}]
  %s6 = inlined_call_operand.vmem [shape: f32[1,16], index: 6, kind: input, shape index: {}]
  %s7 = inlined_call_operand.vmem [shape: f32[1,32], index: 7, kind: input, shape index: {}]
  %s8 = inlined_call_operand.hbm [shape: f32[4,8,32], index: 8, kind: output, shape index: {0}]
  %s9 = inlined_call_operand.hbm [shape: f32[4,8,32], index: 9, kind: output, shape index: {1}]
  %10 = xla_tuple %s8, %s9
  %s11 = sld [smem:[#allocation0]]
  $region50: #{tpu_custom_call.1} parent=0
    _
  %s13 = ssub.s32 1, %s11
  %s14 = scalar_select 0, %s13, %s11
  $region1: #{tpu_custom_call.1} parent=0
    #allocation2 [shape = 'u8[16384]{0}', space=vmem, size = 0x4000, scoped, tag = 'output window, operand 0, single buffered']
    #allocation3 [shape = 's32[1]{0}', space=sflag, size = 0x4, scoped, tag = 'scoped memory for tpu_custom_call.1']
    #allocation4 [shape = 'u8[16384]{0}', space=vmem, size = 0x4000, scoped, tag = 'output window, operand 1, single buffered']
    #allocation5 [shape = 's32[1]{0}', space=sflag, size = 0x4, scoped, tag = 'scoped memory for tpu_custom_call.1']
    %15 = vsyncpa [#allocation3], 0
    %16 = vsyncpa [#allocation5], 0
    // Predicated region
    $region2: #{tpu_custom_call.1} parent=1 // pred_check
      _
    $region3: #{tpu_custom_call.1} parent=1 // pred_check_branch
      %18 = sbr.rel (0) target = $region5
    $region4: #{tpu_custom_call.1} parent=1 // pred_region
      _
    $region5: #{tpu_custom_call.1} parent=1 // pred_fallthru
      _
    // Predicated region
    $region6: #{tpu_custom_call.1} parent=1 // pred_check
      _
    $region7: #{tpu_custom_call.1} parent=1 // pred_check_branch
      %20 = sbr.rel (0) target = $region9
    $region8: #{tpu_custom_call.1} parent=1 // pred_region
      _
    $region9: #{tpu_custom_call.1} parent=1 // pred_fallthru
      _
    // Predicated region
    $region10: #{tpu_custom_call.1} parent=1 // pred_check
      _
    $region11: #{tpu_custom_call.1} parent=1 // pred_check_branch
      %22 = sbr.rel (0) target = $region13
    $region12: #{tpu_custom_call.1} parent=1 // pred_region
      _
    $region13: #{tpu_custom_call.1} parent=1 // pred_fallthru
      _
    // Predicated region
    $region14: #{tpu_custom_call.1} parent=1 // pred_check
      _
    $region15: #{tpu_custom_call.1} parent=1 // pred_check_branch
      %24 = sbr.rel (0) target = $region17
    $region16: #{tpu_custom_call.1} parent=1 // pred_region
      _
    $region17: #{tpu_custom_call.1} parent=1 // pred_fallthru
      _
    // Predicated region
    $region18: #{tpu_custom_call.1} parent=1 // pred_check
      _
    $region19: #{tpu_custom_call.1} parent=1 // pred_check_branch
      %26 = sbr.rel (0) target = $region21
    $region20: #{tpu_custom_call.1} parent=1 // pred_region
      _
    $region21: #{tpu_custom_call.1} parent=1 // pred_fallthru
      _
    // Predicated region
    $region22: #{tpu_custom_call.1} parent=1 // pred_check
      _
    $region23: #{tpu_custom_call.1} parent=1 // pred_check_branch
      %28 = sbr.rel (0) target = $region25
    $region24: #{tpu_custom_call.1} parent=1 // pred_region
      _
    $region25: #{tpu_custom_call.1} parent=1 // pred_fallthru
      _
    // Predicated region
    $region26: #{tpu_custom_call.1} parent=1 // pred_check
      _
    $region27: #{tpu_custom_call.1} parent=1 // pred_check_branch
      %30 = sbr.rel (0) target = $region29
    $region28: #{tpu_custom_call.1} parent=1 // pred_region
      _
    $region29: #{tpu_custom_call.1} parent=1 // pred_fallthru
      _
    // Predicated region
    $region30: #{tpu_custom_call.1} parent=1 // pred_check
      _
    $region31: #{tpu_custom_call.1} parent=1 // pred_check_branch
      %32 = sbr.rel (0) target = $region33
    $region32: #{tpu_custom_call.1} parent=1 // pred_region
      _
    $region33: #{tpu_custom_call.1} parent=1 // pred_fallthru
      _
    %v33 = vld [vmem:[%s0] sm:$0xff]
    %v34 = vld [vmem:[%s0 + $0x8] sm:$0xff]
    %v35 = vld [vmem:[%s0 + $0x10] sm:$0xff]
    %v36 = vld [vmem:[%s0 + $0x18] sm:$0xff]
    %v37 = vld [vmem:[%s1] sm:$0xff]
    %v38 = vld [vmem:[%s1 + $0x8] sm:$0xff]
    %v39 = vld [vmem:[%s1 + $0x10] sm:$0xff]
    %v40 = vld [vmem:[%s1 + $0x18] sm:$0xff]
    %v41 = vld [vmem:[%s2] sm:$0xff]
    %v42 = vld [vmem:[%s2 + $0x8] sm:$0xff]
    %v43 = vld [vmem:[%s2 + $0x10] sm:$0xff]
    %v44 = vld [vmem:[%s2 + $0x18] sm:$0xff]
    %v45 = vld [vmem:[%s3] sm:$0xff]
    %v46 = vld [vmem:[%s3 + $0x8] sm:$0xff]
    %v47 = vld [vmem:[%s3 + $0x10] sm:$0xff]
    %v48 = vld [vmem:[%s3 + $0x18] sm:$0xff]
    %v49 = vld [vmem:[%s4] sm:$0xff]
    %v50 = vld [vmem:[%s4 + $0x8] sm:$0xff]
    %v51 = vld [vmem:[%s4 + $0x10] sm:$0xff]
    %v52 = vld [vmem:[%s4 + $0x18] sm:$0xff]
    %v53 = vld [vmem:[%s5] sm:$0x1]
    %v55 = vlaneseq
    %v56 = vshrl.u32 %v55, 7
    %v57 = vsub.s32 0, %v56
    %v58 = vrot.slane %v53, %v57
    %vm60 = vcmask 261120
    %v62 = vsel %vm60, %v33, 0
    %v65 = vsel %vm60, %v34, 0
    %v68 = vsel %vm60, %v35, 0
    %v71 = vsel %vm60, %v36, 0
    %73 = vmatprep.subr.mxu0 0.0
    %74 = vmatpush1.msra.mxu0 %v41
    %75 = vmatprep.subr.mxu0 0.0
    %76 = vmatpush1.msra.mxu0 %v42
    %77 = vmatprep.subr.mxu0 0.0
    %78 = vmatpush1.msra.mxu0 %v43
    %79 = vmatprep.subr.mxu0 0.0
    %80 = vmatpush1.msra.mxu0 %v44
    %81 = vmatprep.subr.mxu0 0.0
    %82 = vmatpush1.msra.mxu0 0.0
    %83 = vmatprep.subr.mxu0 0.0
    %84 = vmatpush1.msra.mxu0 0.0
    %85 = vmatprep.subr.mxu0 0.0
    %86 = vmatpush1.msra.mxu0 0.0
    %87 = vmatprep.subr.mxu0 0.0
    %88 = vmatpush1.msra.mxu0 0.0
    %89 = vmatprep.subr.mxu0 0.0
    %90 = vmatpush1.msra.mxu0 0.0
    %91 = vmatprep.subr.mxu0 0.0
    %92 = vmatpush1.msra.mxu0 0.0
    %93 = vmatprep.subr.mxu0 0.0
    %94 = vmatpush1.msra.mxu0 0.0
    %95 = vmatprep.subr.mxu0 0.0
    %96 = vmatpush1.msra.mxu0 0.0
    %97 = vmatprep.subr.mxu0 0.0
    %98 = vmatpush1.msra.mxu0 0.0
    %99 = vmatprep.subr.mxu0 0.0
    %100 = vmatpush1.msra.mxu0 0.0
    %101 = vmatprep.subr.mxu0 0.0
    %102 = vmatpush1.msra.mxu0 0.0
    %103 = vmatprep.subr.mxu0 0.0
    %104 = vmatpush1.msra.mxu0 0.0
    %105 = vmatprep.subr.mxu0 0.0
    %106 = vmatpush1.msra.mxu0 0.0
    %107 = vmatprep.subr.mxu0 0.0
    %108 = vmatpush1.msra.mxu0 0.0
    %109 = vmatprep.subr.mxu0 0.0
    %110 = vmatpush1.msra.mxu0 0.0
    %111 = vmatprep.subr.mxu0 0.0
    %112 = vmatpush1.msra.mxu0 0.0
    %113 = vmatprep.subr.mxu0 0.0
    %114 = vmatpush1.msra.mxu0 0.0
    %115 = vmatprep.subr.mxu0 0.0
    %116 = vmatpush1.msra.mxu0 0.0
    %117 = vmatprep.subr.mxu0 0.0
    %118 = vmatpush1.msra.mxu0 0.0
    %119 = vmatprep.subr.mxu0 0.0
    %120 = vmatpush1.msra.mxu0 0.0
    %121 = vmatprep.subr.mxu0 0.0
    %122 = vmatpush1.msra.mxu0 0.0
    %123 = vmatprep.subr.mxu0 0.0
    %124 = vmatpush1.msra.mxu0 0.0
    %125 = vmatprep.subr.mxu0 0.0
    %126 = vmatpush1.msra.mxu0 0.0
    %127 = vmatprep.subr.mxu0 0.0
    %128 = vmatpush1.msra.mxu0 0.0
    %129 = vmatprep.subr.mxu0 0.0
    %130 = vmatpush1.msra.mxu0 0.0
    %131 = vmatprep.subr.mxu0 0.0
    %132 = vmatpush1.msra.mxu0 0.0
    %133 = vmatprep.subr.mxu0 0.0
    %134 = vmatpush1.msra.mxu0 0.0
    %135 = vmatprep.subr.mxu0 0.0
    %136 = vmatpush1.msra.mxu0 0.0
    %137 = vmatprep.mubr.f32.mxu0 0.0
    %138 = vmatmul.mubr.f32.gmra.mrb[0].mxu0 %v62
    %v139 = vpop.f32.mrb[0].mxu0
    %v140 = vadd.f32 %v58, %v139
    %v141 = vpop.f32.mrb[0].mxu0
    %142 = vmatprep.mubr.f32.mxu0 0.0
    %143 = vmatmul.mubr.f32.gmra.mrb[0].mxu0 %v65
    %v144 = vpop.f32.mrb[0].mxu0
    %v145 = vadd.f32 %v58, %v144
    %v146 = vpop.f32.mrb[0].mxu0
    %147 = vmatprep.mubr.f32.mxu0 0.0
    %148 = vmatmul.mubr.f32.gmra.mrb[0].mxu0 %v68
    %v149 = vpop.f32.mrb[0].mxu0
    %v150 = vadd.f32 %v58, %v149
    %v151 = vpop.f32.mrb[0].mxu0
    %152 = vmatprep.mubr.f32.mxu0 0.0
    %153 = vmatmul.mubr.f32.gmra.mrb[0].mxu0 %v71
    %v154 = vpop.f32.mrb[0].mxu0
    %v155 = vadd.f32 %v58, %v154
    %v156 = vpop.f32.mrb[0].mxu0
    %157 = vdwg.mxu0
    %v158 = vld [vmem:[%s6] sm:$0x1]
    %v160 = vlaneseq
    %v161 = vshrl.u32 %v160, 7
    %v162 = vsub.s32 0, %v161
    %v163 = vrot.slane %v158, %v162
    %v166 = vsel %vm60, %v37, 0
    %v169 = vsel %vm60, %v38, 0
    %v172 = vsel %vm60, %v39, 0
    %v175 = vsel %vm60, %v40, 0
    %177 = vmatprep.subr.mxu0 0.0
    %178 = vmatpush1.msra.mxu0 %v45
    %179 = vmatprep.subr.mxu0 0.0
    %180 = vmatpush1.msra.mxu0 %v46
    %181 = vmatprep.subr.mxu0 0.0
    %182 = vmatpush1.msra.mxu0 %v47
    %183 = vmatprep.subr.mxu0 0.0
    %184 = vmatpush1.msra.mxu0 %v48
    %185 = vmatprep.subr.mxu0 0.0
    %186 = vmatpush1.msra.mxu0 0.0
    %187 = vmatprep.subr.mxu0 0.0
    %188 = vmatpush1.msra.mxu0 0.0
    %189 = vmatprep.subr.mxu0 0.0
    %190 = vmatpush1.msra.mxu0 0.0
    %191 = vmatprep.subr.mxu0 0.0
    %192 = vmatpush1.msra.mxu0 0.0
    %193 = vmatprep.subr.mxu0 0.0
    %194 = vmatpush1.msra.mxu0 0.0
    %195 = vmatprep.subr.mxu0 0.0
    %196 = vmatpush1.msra.mxu0 0.0
    %197 = vmatprep.subr.mxu0 0.0
    %198 = vmatpush1.msra.mxu0 0.0
    %199 = vmatprep.subr.mxu0 0.0
    %200 = vmatpush1.msra.mxu0 0.0
    %201 = vmatprep.subr.mxu0 0.0
    %202 = vmatpush1.msra.mxu0 0.0
    %203 = vmatprep.subr.mxu0 0.0
    %204 = vmatpush1.msra.mxu0 0.0
    %205 = vmatprep.subr.mxu0 0.0
    %206 = vmatpush1.msra.mxu0 0.0
    %207 = vmatprep.subr.mxu0 0.0
    %208 = vmatpush1.msra.mxu0 0.0
    %209 = vmatprep.subr.mxu0 0.0
    %210 = vmatpush1.msra.mxu0 0.0
    %211 = vmatprep.subr.mxu0 0.0
    %212 = vmatpush1.msra.mxu0 0.0
    %213 = vmatprep.subr.mxu0 0.0
    %214 = vmatpush1.msra.mxu0 0.0
    %215 = vmatprep.subr.mxu0 0.0
    %216 = vmatpush1.msra.mxu0 0.0
    %217 = vmatprep.subr.mxu0 0.0
    %218 = vmatpush1.msra.mxu0 0.0
    %219 = vmatprep.subr.mxu0 0.0
    %220 = vmatpush1.msra.mxu0 0.0
    %221 = vmatprep.subr.mxu0 0.0
    %222 = vmatpush1.msra.mxu0 0.0
    %223 = vmatprep.subr.mxu0 0.0
    %224 = vmatpush1.msra.mxu0 0.0
    %225 = vmatprep.subr.mxu0 0.0
    %226 = vmatpush1.msra.mxu0 0.0
    %227 = vmatprep.subr.mxu0 0.0
    %228 = vmatpush1.msra.mxu0 0.0
    %229 = vmatprep.subr.mxu0 0.0
    %230 = vmatpush1.msra.mxu0 0.0
    %231 = vmatprep.subr.mxu0 0.0
    %232 = vmatpush1.msra.mxu0 0.0
    %233 = vmatprep.subr.mxu0 0.0
    %234 = vmatpush1.msra.mxu0 0.0
    %235 = vmatprep.subr.mxu0 0.0
    %236 = vmatpush1.msra.mxu0 0.0
    %237 = vmatprep.subr.mxu0 0.0
    %238 = vmatpush1.msra.mxu0 0.0
    %239 = vmatprep.subr.mxu0 0.0
    %240 = vmatpush1.msra.mxu0 0.0
    %241 = vmatprep.mubr.f32.mxu0 0.0
    %242 = vmatmul.mubr.f32.gmra.mrb[0].mxu0 %v166
    %v243 = vpop.f32.mrb[0].mxu0
    %v244 = vadd.f32 %v163, %v243
    %v245 = vpop.f32.mrb[0].mxu0
    %246 = vmatprep.mubr.f32.mxu0 0.0
    %247 = vmatmul.mubr.f32.gmra.mrb[0].mxu0 %v169
    %v248 = vpop.f32.mrb[0].mxu0
    %v249 = vadd.f32 %v163, %v248
    %v250 = vpop.f32.mrb[0].mxu0
    %251 = vmatprep.mubr.f32.mxu0 0.0
    %252 = vmatmul.mubr.f32.gmra.mrb[0].mxu0 %v172
    %v253 = vpop.f32.mrb[0].mxu0
    %v254 = vadd.f32 %v163, %v253
    %v255 = vpop.f32.mrb[0].mxu0
    %256 = vmatprep.mubr.f32.mxu0 0.0
    %257 = vmatmul.mubr.f32.gmra.mrb[0].mxu0 %v175
    %v258 = vpop.f32.mrb[0].mxu0
    %v259 = vadd.f32 %v163, %v258
    %v260 = vpop.f32.mrb[0].mxu0
    %261 = vdwg.mxu0
    %v262 = vld [vmem:[%s7] sm:$0x1]
    %v264 = vlaneseq
    %v265 = vshrl.u32 %v264, 7
    %v266 = vsub.s32 0, %v265
    %v267 = vrot.slane %v262, %v266
    %269 = vmatprep.subr.mxu0 0.0
    %270 = vmatpush1.msra.mxu0 %v49
    %271 = vmatprep.subr.mxu0 0.0
    %272 = vmatpush1.msra.mxu0 %v50
    %273 = vmatprep.subr.mxu0 0.0
    %274 = vmatpush1.msra.mxu0 %v51
    %275 = vmatprep.subr.mxu0 0.0
    %276 = vmatpush1.msra.mxu0 %v52
    %277 = vmatprep.subr.mxu0 0.0
    %278 = vmatpush1.msra.mxu0 0.0
    %279 = vmatprep.subr.mxu0 0.0
    %280 = vmatpush1.msra.mxu0 0.0
    %281 = vmatprep.subr.mxu0 0.0
    %282 = vmatpush1.msra.mxu0 0.0
    %283 = vmatprep.subr.mxu0 0.0
    %284 = vmatpush1.msra.mxu0 0.0
    %285 = vmatprep.subr.mxu0 0.0
    %286 = vmatpush1.msra.mxu0 0.0
    %287 = vmatprep.subr.mxu0 0.0
    %288 = vmatpush1.msra.mxu0 0.0
    %289 = vmatprep.subr.mxu0 0.0
    %290 = vmatpush1.msra.mxu0 0.0
    %291 = vmatprep.subr.mxu0 0.0
    %292 = vmatpush1.msra.mxu0 0.0
    %293 = vmatprep.subr.mxu0 0.0
    %294 = vmatpush1.msra.mxu0 0.0
    %295 = vmatprep.subr.mxu0 0.0
    %296 = vmatpush1.msra.mxu0 0.0
    %297 = vmatprep.subr.mxu0 0.0
    %298 = vmatpush1.msra.mxu0 0.0
    %299 = vmatprep.subr.mxu0 0.0
    %300 = vmatpush1.msra.mxu0 0.0
    %301 = vmatprep.subr.mxu0 0.0
    %302 = vmatpush1.msra.mxu0 0.0
    %303 = vmatprep.subr.mxu0 0.0
    %304 = vmatpush1.msra.mxu0 0.0
    %305 = vmatprep.subr.mxu0 0.0
    %306 = vmatpush1.msra.mxu0 0.0
    %307 = vmatprep.subr.mxu0 0.0
    %308 = vmatpush1.msra.mxu0 0.0
    %309 = vmatprep.subr.mxu0 0.0
    %310 = vmatpush1.msra.mxu0 0.0
    %311 = vmatprep.subr.mxu0 0.0
    %312 = vmatpush1.msra.mxu0 0.0
    %313 = vmatprep.subr.mxu0 0.0
    %314 = vmatpush1.msra.mxu0 0.0
    %315 = vmatprep.subr.mxu0 0.0
    %316 = vmatpush1.msra.mxu0 0.0
    %317 = vmatprep.subr.mxu0 0.0
    %318 = vmatpush1.msra.mxu0 0.0
    %319 = vmatprep.subr.mxu0 0.0
    %320 = vmatpush1.msra.mxu0 0.0
    %321 = vmatprep.subr.mxu0 0.0
    %322 = vmatpush1.msra.mxu0 0.0
    %323 = vmatprep.subr.mxu0 0.0
    %324 = vmatpush1.msra.mxu0 0.0
    %325 = vmatprep.subr.mxu0 0.0
    %326 = vmatpush1.msra.mxu0 0.0
    %327 = vmatprep.subr.mxu0 0.0
    %328 = vmatpush1.msra.mxu0 0.0
    %329 = vmatprep.subr.mxu0 0.0
    %330 = vmatpush1.msra.mxu0 0.0
    %331 = vmatprep.subr.mxu0 0.0
    %332 = vmatpush1.msra.mxu0 0.0
    %333 = vmatprep.mubr.f32.mxu0 0.0
    %334 = vmatmul.mubr.f32.gmra.mrb[0].mxu0 %v166
    %v335 = vpop.f32.mrb[0].mxu0
    %v336 = vadd.f32 %v267, %v335
    %v337 = vpop.f32.mrb[0].mxu0
    %338 = vmatprep.mubr.f32.mxu0 0.0
    %339 = vmatmul.mubr.f32.gmra.mrb[0].mxu0 %v169
    %v340 = vpop.f32.mrb[0].mxu0
    %v341 = vadd.f32 %v267, %v340
    %v342 = vpop.f32.mrb[0].mxu0
    %343 = vmatprep.mubr.f32.mxu0 0.0
    %344 = vmatmul.mubr.f32.gmra.mrb[0].mxu0 %v172
    %v345 = vpop.f32.mrb[0].mxu0
    %v346 = vadd.f32 %v267, %v345
    %v347 = vpop.f32.mrb[0].mxu0
    %348 = vmatprep.mubr.f32.mxu0 0.0
    %349 = vmatmul.mubr.f32.gmra.mrb[0].mxu0 %v175
    %v350 = vpop.f32.mrb[0].mxu0
    %v351 = vadd.f32 %v267, %v350
    %v352 = vpop.f32.mrb[0].mxu0
    %353 = vdwg.mxu0
    %vm354 = vcmask 130048
    %v356 = vsel %vm354, %v140, 0
    %v359 = vsel %vm354, %v244, 0
    %361 = vmatprep.subr.mxu0 0.0
    %362 = vmatpush1.xpose.msra.mxu0 %v359
    %363 = vmatprep.subr.mxu0 0.0
    %364 = vmatpush1.xpose.msra.mxu0 0.0
    %365 = vmatprep.subr.mxu0 0.0
    %366 = vmatpush1.xpose.msra.mxu0 0.0
    %367 = vmatprep.subr.mxu0 0.0
    %368 = vmatpush1.xpose.msra.mxu0 0.0
    %369 = vmatprep.subr.mxu0 0.0
    %370 = vmatpush1.xpose.msra.mxu0 0.0
    %371 = vmatprep.subr.mxu0 0.0
    %372 = vmatpush1.xpose.msra.mxu0 0.0
    %373 = vmatprep.subr.mxu0 0.0
    %374 = vmatpush1.xpose.msra.mxu0 0.0
    %375 = vmatprep.subr.mxu0 0.0
    %376 = vmatpush1.xpose.msra.mxu0 0.0
    %377 = vmatprep.subr.mxu0 0.0
    %378 = vmatpush1.xpose.msra.mxu0 0.0
    %379 = vmatprep.subr.mxu0 0.0
    %380 = vmatpush1.xpose.msra.mxu0 0.0
    %381 = vmatprep.subr.mxu0 0.0
    %382 = vmatpush1.xpose.msra.mxu0 0.0
    %383 = vmatprep.subr.mxu0 0.0
    %384 = vmatpush1.xpose.msra.mxu0 0.0
    %385 = vmatprep.subr.mxu0 0.0
    %386 = vmatpush1.xpose.msra.mxu0 0.0
    %387 = vmatprep.subr.mxu0 0.0
    %388 = vmatpush1.xpose.msra.mxu0 0.0
    %389 = vmatprep.subr.mxu0 0.0
    %390 = vmatpush1.xpose.msra.mxu0 0.0
    %391 = vmatprep.subr.mxu0 0.0
    %392 = vmatpush1.xpose.msra.mxu0 0.0
    %393 = vmatprep.subr.mxu0 0.0
    %394 = vmatpush1.xpose.msra.mxu0 0.0
    %395 = vmatprep.subr.mxu0 0.0
    %396 = vmatpush1.xpose.msra.mxu0 0.0
    %397 = vmatprep.subr.mxu0 0.0
    %398 = vmatpush1.xpose.msra.mxu0 0.0
    %399 = vmatprep.subr.mxu0 0.0
    %400 = vmatpush1.xpose.msra.mxu0 0.0
    %401 = vmatprep.subr.mxu0 0.0
    %402 = vmatpush1.xpose.msra.mxu0 0.0
    %403 = vmatprep.subr.mxu0 0.0
    %404 = vmatpush1.xpose.msra.mxu0 0.0
    %405 = vmatprep.subr.mxu0 0.0
    %406 = vmatpush1.xpose.msra.mxu0 0.0
    %407 = vmatprep.subr.mxu0 0.0
    %408 = vmatpush1.xpose.msra.mxu0 0.0
    %409 = vmatprep.subr.mxu0 0.0
    %410 = vmatpush1.xpose.msra.mxu0 0.0
    %411 = vmatprep.subr.mxu0 0.0
    %412 = vmatpush1.xpose.msra.mxu0 0.0
    %413 = vmatprep.subr.mxu0 0.0
    %414 = vmatpush1.xpose.msra.mxu0 0.0
    %415 = vmatprep.subr.mxu0 0.0
    %416 = vmatpush1.xpose.msra.mxu0 0.0
    %417 = vmatprep.subr.mxu0 0.0
    %418 = vmatpush1.xpose.msra.mxu0 0.0
    %419 = vmatprep.subr.mxu0 0.0
    %420 = vmatpush1.xpose.msra.mxu0 0.0
    %421 = vmatprep.subr.mxu0 0.0
    %422 = vmatpush1.xpose.msra.mxu0 0.0
    %423 = vmatprep.subr.mxu0 0.0
    %424 = vmatpush1.xpose.msra.mxu0 0.0
    %425 = vmatprep.mubr.f32.mxu0 0.0
    %426 = vmatmul.mubr.f32.gmra.mrb[0].mxu0 %v356
    %v427 = vpop.f32.mrb[0].mxu0
    %v428 = vadd.f32 0.0, %v427
    %v429 = vpop.f32.mrb[0].mxu0
    %430 = vdwg.mxu0
    %v432 = vsel %vm354, %v145, 0
    %v435 = vsel %vm354, %v249, 0
    %437 = vmatprep.subr.mxu0 0.0
    %438 = vmatpush1.xpose.msra.mxu0 %v435
    %439 = vmatprep.subr.mxu0 0.0
    %440 = vmatpush1.xpose.msra.mxu0 0.0
    %441 = vmatprep.subr.mxu0 0.0
    %442 = vmatpush1.xpose.msra.mxu0 0.0
    %443 = vmatprep.subr.mxu0 0.0
    %444 = vmatpush1.xpose.msra.mxu0 0.0
    %445 = vmatprep.subr.mxu0 0.0
    %446 = vmatpush1.xpose.msra.mxu0 0.0
    %447 = vmatprep.subr.mxu0 0.0
    %448 = vmatpush1.xpose.msra.mxu0 0.0
    %449 = vmatprep.subr.mxu0 0.0
    %450 = vmatpush1.xpose.msra.mxu0 0.0
    %451 = vmatprep.subr.mxu0 0.0
    %452 = vmatpush1.xpose.msra.mxu0 0.0
    %453 = vmatprep.subr.mxu0 0.0
    %454 = vmatpush1.xpose.msra.mxu0 0.0
    %455 = vmatprep.subr.mxu0 0.0
    %456 = vmatpush1.xpose.msra.mxu0 0.0
    %457 = vmatprep.subr.mxu0 0.0
    %458 = vmatpush1.xpose.msra.mxu0 0.0
    %459 = vmatprep.subr.mxu0 0.0
    %460 = vmatpush1.xpose.msra.mxu0 0.0
    %461 = vmatprep.subr.mxu0 0.0
    %462 = vmatpush1.xpose.msra.mxu0 0.0
    %463 = vmatprep.subr.mxu0 0.0
    %464 = vmatpush1.xpose.msra.mxu0 0.0
    %465 = vmatprep.subr.mxu0 0.0
    %466 = vmatpush1.xpose.msra.mxu0 0.0
    %467 = vmatprep.subr.mxu0 0.0
    %468 = vmatpush1.xpose.msra.mxu0 0.0
    %469 = vmatprep.subr.mxu0 0.0
    %470 = vmatpush1.xpose.msra.mxu0 0.0
    %471 = vmatprep.subr.mxu0 0.0
    %472 = vmatpush1.xpose.msra.mxu0 0.0
    %473 = vmatprep.subr.mxu0 0.0
    %474 = vmatpush1.xpose.msra.mxu0 0.0
    %475 = vmatprep.subr.mxu0 0.0
    %476 = vmatpush1.xpose.msra.mxu0 0.0
    %477 = vmatprep.subr.mxu0 0.0
    %478 = vmatpush1.xpose.msra.mxu0 0.0
    %479 = vmatprep.subr.mxu0 0.0
    %480 = vmatpush1.xpose.msra.mxu0 0.0
    %481 = vmatprep.subr.mxu0 0.0
    %482 = vmatpush1.xpose.msra.mxu0 0.0
    %483 = vmatprep.subr.mxu0 0.0
    %484 = vmatpush1.xpose.msra.mxu0 0.0
    %485 = vmatprep.subr.mxu0 0.0
    %486 = vmatpush1.xpose.msra.mxu0 0.0
    %487 = vmatprep.subr.mxu0 0.0
    %488 = vmatpush1.xpose.msra.mxu0 0.0
    %489 = vmatprep.subr.mxu0 0.0
    %490 = vmatpush1.xpose.msra.mxu0 0.0
    %491 = vmatprep.subr.mxu0 0.0
    %492 = vmatpush1.xpose.msra.mxu0 0.0
    %493 = vmatprep.subr.mxu0 0.0
    %494 = vmatpush1.xpose.msra.mxu0 0.0
    %495 = vmatprep.subr.mxu0 0.0
    %496 = vmatpush1.xpose.msra.mxu0 0.0
    %497 = vmatprep.subr.mxu0 0.0
    %498 = vmatpush1.xpose.msra.mxu0 0.0
    %499 = vmatprep.subr.mxu0 0.0
    %500 = vmatpush1.xpose.msra.mxu0 0.0
    %501 = vmatprep.mubr.f32.mxu0 0.0
    %502 = vmatmul.mubr.f32.gmra.mrb[0].mxu0 %v432
    %v503 = vpop.f32.mrb[0].mxu0
    %v504 = vadd.f32 0.0, %v503
    %v505 = vpop.f32.mrb[0].mxu0
    %506 = vdwg.mxu0
    %v508 = vsel %vm354, %v150, 0
    %v511 = vsel %vm354, %v254, 0
    %513 = vmatprep.subr.mxu0 0.0
    %514 = vmatpush1.xpose.msra.mxu0 %v511
    %515 = vmatprep.subr.mxu0 0.0
    %516 = vmatpush1.xpose.msra.mxu0 0.0
    %517 = vmatprep.subr.mxu0 0.0
    %518 = vmatpush1.xpose.msra.mxu0 0.0
    %519 = vmatprep.subr.mxu0 0.0
    %520 = vmatpush1.xpose.msra.mxu0 0.0
    %521 = vmatprep.subr.mxu0 0.0
    %522 = vmatpush1.xpose.msra.mxu0 0.0
    %523 = vmatprep.subr.mxu0 0.0
    %524 = vmatpush1.xpose.msra.mxu0 0.0
    %525 = vmatprep.subr.mxu0 0.0
    %526 = vmatpush1.xpose.msra.mxu0 0.0
    %527 = vmatprep.subr.mxu0 0.0
    %528 = vmatpush1.xpose.msra.mxu0 0.0
    %529 = vmatprep.subr.mxu0 0.0
    %530 = vmatpush1.xpose.msra.mxu0 0.0
    %531 = vmatprep.subr.mxu0 0.0
    %532 = vmatpush1.xpose.msra.mxu0 0.0
    %533 = vmatprep.subr.mxu0 0.0
    %534 = vmatpush1.xpose.msra.mxu0 0.0
    %535 = vmatprep.subr.mxu0 0.0
    %536 = vmatpush1.xpose.msra.mxu0 0.0
    %537 = vmatprep.subr.mxu0 0.0
    %538 = vmatpush1.xpose.msra.mxu0 0.0
    %539 = vmatprep.subr.mxu0 0.0
    %540 = vmatpush1.xpose.msra.mxu0 0.0
    %541 = vmatprep.subr.mxu0 0.0
    %542 = vmatpush1.xpose.msra.mxu0 0.0
    %543 = vmatprep.subr.mxu0 0.0
    %544 = vmatpush1.xpose.msra.mxu0 0.0
    %545 = vmatprep.subr.mxu0 0.0
    %546 = vmatpush1.xpose.msra.mxu0 0.0
    %547 = vmatprep.subr.mxu0 0.0
    %548 = vmatpush1.xpose.msra.mxu0 0.0
    %549 = vmatprep.subr.mxu0 0.0
    %550 = vmatpush1.xpose.msra.mxu0 0.0
    %551 = vmatprep.subr.mxu0 0.0
    %552 = vmatpush1.xpose.msra.mxu0 0.0
    %553 = vmatprep.subr.mxu0 0.0
    %554 = vmatpush1.xpose.msra.mxu0 0.0
    %555 = vmatprep.subr.mxu0 0.0
    %556 = vmatpush1.xpose.msra.mxu0 0.0
    %557 = vmatprep.subr.mxu0 0.0
    %558 = vmatpush1.xpose.msra.mxu0 0.0
    %559 = vmatprep.subr.mxu0 0.0
    %560 = vmatpush1.xpose.msra.mxu0 0.0
    %561 = vmatprep.subr.mxu0 0.0
    %562 = vmatpush1.xpose.msra.mxu0 0.0
    %563 = vmatprep.subr.mxu0 0.0
    %564 = vmatpush1.xpose.msra.mxu0 0.0
    %565 = vmatprep.subr.mxu0 0.0
    %566 = vmatpush1.xpose.msra.mxu0 0.0
    %567 = vmatprep.subr.mxu0 0.0
    %568 = vmatpush1.xpose.msra.mxu0 0.0
    %569 = vmatprep.subr.mxu0 0.0
    %570 = vmatpush1.xpose.msra.mxu0 0.0
    %571 = vmatprep.subr.mxu0 0.0
    %572 = vmatpush1.xpose.msra.mxu0 0.0
    %573 = vmatprep.subr.mxu0 0.0
    %574 = vmatpush1.xpose.msra.mxu0 0.0
    %575 = vmatprep.subr.mxu0 0.0
    %576 = vmatpush1.xpose.msra.mxu0 0.0
    %577 = vmatprep.mubr.f32.mxu0 0.0
    %578 = vmatmul.mubr.f32.gmra.mrb[0].mxu0 %v508
    %v579 = vpop.f32.mrb[0].mxu0
    %v580 = vadd.f32 0.0, %v579
    %v581 = vpop.f32.mrb[0].mxu0
    %582 = vdwg.mxu0
    %v584 = vsel %vm354, %v155, 0
    %v587 = vsel %vm354, %v259, 0
    %589 = vmatprep.subr.mxu0 0.0
    %590 = vmatpush1.xpose.msra.mxu0 %v587
    %591 = vmatprep.subr.mxu0 0.0
    %592 = vmatpush1.xpose.msra.mxu0 0.0
    %593 = vmatprep.subr.mxu0 0.0
    %594 = vmatpush1.xpose.msra.mxu0 0.0
    %595 = vmatprep.subr.mxu0 0.0
    %596 = vmatpush1.xpose.msra.mxu0 0.0
    %597 = vmatprep.subr.mxu0 0.0
    %598 = vmatpush1.xpose.msra.mxu0 0.0
    %599 = vmatprep.subr.mxu0 0.0
    %600 = vmatpush1.xpose.msra.mxu0 0.0
    %601 = vmatprep.subr.mxu0 0.0
    %602 = vmatpush1.xpose.msra.mxu0 0.0
    %603 = vmatprep.subr.mxu0 0.0
    %604 = vmatpush1.xpose.msra.mxu0 0.0
    %605 = vmatprep.subr.mxu0 0.0
    %606 = vmatpush1.xpose.msra.mxu0 0.0
    %607 = vmatprep.subr.mxu0 0.0
    %608 = vmatpush1.xpose.msra.mxu0 0.0
    %609 = vmatprep.subr.mxu0 0.0
    %610 = vmatpush1.xpose.msra.mxu0 0.0
    %611 = vmatprep.subr.mxu0 0.0
    %612 = vmatpush1.xpose.msra.mxu0 0.0
    %613 = vmatprep.subr.mxu0 0.0
    %614 = vmatpush1.xpose.msra.mxu0 0.0
    %615 = vmatprep.subr.mxu0 0.0
    %616 = vmatpush1.xpose.msra.mxu0 0.0
    %617 = vmatprep.subr.mxu0 0.0
    %618 = vmatpush1.xpose.msra.mxu0 0.0
    %619 = vmatprep.subr.mxu0 0.0
    %620 = vmatpush1.xpose.msra.mxu0 0.0
    %621 = vmatprep.subr.mxu0 0.0
    %622 = vmatpush1.xpose.msra.mxu0 0.0
    %623 = vmatprep.subr.mxu0 0.0
    %624 = vmatpush1.xpose.msra.mxu0 0.0
    %625 = vmatprep.subr.mxu0 0.0
    %626 = vmatpush1.xpose.msra.mxu0 0.0
    %627 = vmatprep.subr.mxu0 0.0
    %628 = vmatpush1.xpose.msra.mxu0 0.0
    %629 = vmatprep.subr.mxu0 0.0
    %630 = vmatpush1.xpose.msra.mxu0 0.0
    %631 = vmatprep.subr.mxu0 0.0
    %632 = vmatpush1.xpose.msra.mxu0 0.0
    %633 = vmatprep.subr.mxu0 0.0
    %634 = vmatpush1.xpose.msra.mxu0 0.0
    %635 = vmatprep.subr.mxu0 0.0
    %636 = vmatpush1.xpose.msra.mxu0 0.0
    %637 = vmatprep.subr.mxu0 0.0
    %638 = vmatpush1.xpose.msra.mxu0 0.0
    %639 = vmatprep.subr.mxu0 0.0
    %640 = vmatpush1.xpose.msra.mxu0 0.0
    %641 = vmatprep.subr.mxu0 0.0
    %642 = vmatpush1.xpose.msra.mxu0 0.0
    %643 = vmatprep.subr.mxu0 0.0
    %644 = vmatpush1.xpose.msra.mxu0 0.0
    %645 = vmatprep.subr.mxu0 0.0
    %646 = vmatpush1.xpose.msra.mxu0 0.0
    %647 = vmatprep.subr.mxu0 0.0
    %648 = vmatpush1.xpose.msra.mxu0 0.0
    %649 = vmatprep.subr.mxu0 0.0
    %650 = vmatpush1.xpose.msra.mxu0 0.0
    %651 = vmatprep.subr.mxu0 0.0
    %652 = vmatpush1.xpose.msra.mxu0 0.0
    %653 = vmatprep.mubr.f32.mxu0 0.0
    %654 = vmatmul.mubr.f32.gmra.mrb[0].mxu0 %v584
    %v655 = vpop.f32.mrb[0].mxu0
    %v656 = vadd.f32 0.0, %v655
    %v657 = vpop.f32.mrb[0].mxu0
    %658 = vdwg.mxu0
    %vm659 = vcmask 64512
    %v660 = vsel %vm659, %v428, -inf
    %661 = vmax.xlane.f32.xlu0 %v660
    %v662 = vpop.xlane.xlu0 %661
    %v663 = vsel %vm659, %v504, -inf
    %664 = vmax.xlane.f32.xlu0 %v663
    %v665 = vpop.xlane.xlu0 %664
    %v666 = vsel %vm659, %v580, -inf
    %667 = vmax.xlane.f32.xlu0 %v666
    %v668 = vpop.xlane.xlu0 %667
    %v669 = vsel %vm659, %v656, -inf
    %670 = vmax.xlane.f32.xlu0 %v669
    %v671 = vpop.xlane.xlu0 %670
    %v672 = vsub.f32 %v428, %v662
    %v673 = vsub.f32 %v504, %v665
    %v674 = vsub.f32 %v580, %v668
    %v675 = vsub.f32 %v656, %v671
    %v676 = vmul.f32 %v672, 1.442695
    %v677 = vpow.pop %v676
    %v678 = vmul.f32 %v673, 1.442695
    %v679 = vpow.pop %v678
    %v680 = vmul.f32 %v674, 1.442695
    %v681 = vpow.pop %v680
    %v682 = vmul.f32 %v675, 1.442695
    %v683 = vpow.pop %v682
    %v684 = vsel %vm659, %v677, 0.0
    %685 = vadd.xlane.f32.xlu0 %v684
    %v686 = vpop.xlane.xlu0 %685
    %v687 = vsel %vm659, %v679, 0.0
    %688 = vadd.xlane.f32.xlu0 %v687
    %v689 = vpop.xlane.xlu0 %688
    %v690 = vsel %vm659, %v681, 0.0
    %691 = vadd.xlane.f32.xlu0 %v690
    %v692 = vpop.xlane.xlu0 %691
    %v693 = vsel %vm659, %v683, 0.0
    %694 = vadd.xlane.f32.xlu0 %v693
    %v695 = vpop.xlane.xlu0 %694
    %v696 = vrcp.pop %v686
    %v697 = vrcp.pop %v689
    %v698 = vrcp.pop %v692
    %v699 = vrcp.pop %v695
    %v700 = vmul.f32 %v696, 0.25
    %v701 = vmul.f32 %v697, 0.25
    %v702 = vmul.f32 %v698, 0.25
    %v703 = vmul.f32 %v699, 0.25
    %v704 = vmul.f32 %v677, %v700
    %v705 = vmul.f32 %v679, %v701
    %v706 = vmul.f32 %v681, %v702
    %v707 = vmul.f32 %v683, %v703
    %v709 = vsel %vm659, %v704, 0
    %711 = vmatprep.subr.mxu0 0.0
    %712 = vmatpush1.msra.mxu0 %v336
    %713 = vmatprep.subr.mxu0 0.0
    %714 = vmatpush1.msra.mxu0 0.0
    %715 = vmatprep.subr.mxu0 0.0
    %716 = vmatpush1.msra.mxu0 0.0
    %717 = vmatprep.subr.mxu0 0.0
    %718 = vmatpush1.msra.mxu0 0.0
    %719 = vmatprep.subr.mxu0 0.0
    %720 = vmatpush1.msra.mxu0 0.0
    %721 = vmatprep.subr.mxu0 0.0
    %722 = vmatpush1.msra.mxu0 0.0
    %723 = vmatprep.subr.mxu0 0.0
    %724 = vmatpush1.msra.mxu0 0.0
    %725 = vmatprep.subr.mxu0 0.0
    %726 = vmatpush1.msra.mxu0 0.0
    %727 = vmatprep.subr.mxu0 0.0
    %728 = vmatpush1.msra.mxu0 0.0
    %729 = vmatprep.subr.mxu0 0.0
    %730 = vmatpush1.msra.mxu0 0.0
    %731 = vmatprep.subr.mxu0 0.0
    %732 = vmatpush1.msra.mxu0 0.0
    %733 = vmatprep.subr.mxu0 0.0
    %734 = vmatpush1.msra.mxu0 0.0
    %735 = vmatprep.subr.mxu0 0.0
    %736 = vmatpush1.msra.mxu0 0.0
    %737 = vmatprep.subr.mxu0 0.0
    %738 = vmatpush1.msra.mxu0 0.0
    %739 = vmatprep.subr.mxu0 0.0
    %740 = vmatpush1.msra.mxu0 0.0
    %741 = vmatprep.subr.mxu0 0.0
    %742 = vmatpush1.msra.mxu0 0.0
    %743 = vmatprep.subr.mxu0 0.0
    %744 = vmatpush1.msra.mxu0 0.0
    %745 = vmatprep.subr.mxu0 0.0
    %746 = vmatpush1.msra.mxu0 0.0
    %747 = vmatprep.subr.mxu0 0.0
    %748 = vmatpush1.msra.mxu0 0.0
    %749 = vmatprep.subr.mxu0 0.0
    %750 = vmatpush1.msra.mxu0 0.0
    %751 = vmatprep.subr.mxu0 0.0
    %752 = vmatpush1.msra.mxu0 0.0
    %753 = vmatprep.subr.mxu0 0.0
    %754 = vmatpush1.msra.mxu0 0.0
    %755 = vmatprep.subr.mxu0 0.0
    %756 = vmatpush1.msra.mxu0 0.0
    %757 = vmatprep.subr.mxu0 0.0
    %758 = vmatpush1.msra.mxu0 0.0
    %759 = vmatprep.subr.mxu0 0.0
    %760 = vmatpush1.msra.mxu0 0.0
    %761 = vmatprep.subr.mxu0 0.0
    %762 = vmatpush1.msra.mxu0 0.0
    %763 = vmatprep.subr.mxu0 0.0
    %764 = vmatpush1.msra.mxu0 0.0
    %765 = vmatprep.subr.mxu0 0.0
    %766 = vmatpush1.msra.mxu0 0.0
    %767 = vmatprep.subr.mxu0 0.0
    %768 = vmatpush1.msra.mxu0 0.0
    %769 = vmatprep.subr.mxu0 0.0
    %770 = vmatpush1.msra.mxu0 0.0
    %771 = vmatprep.subr.mxu0 0.0
    %772 = vmatpush1.msra.mxu0 0.0
    %773 = vmatprep.subr.mxu0 0.0
    %774 = vmatpush1.msra.mxu0 0.0
    %775 = vmatprep.mubr.f32.mxu0 0.0
    %776 = vmatmul.mubr.f32.gmra.mrb[0].mxu0 %v709
    %v777 = vpop.f32.mrb[0].mxu0
    %v778 = vadd.f32 0.0, %v777
    %v779 = vpop.f32.mrb[0].mxu0
    %780 = vdwg.mxu0
    %v782 = vsel %vm659, %v705, 0
    %784 = vmatprep.subr.mxu0 0.0
    %785 = vmatpush1.msra.mxu0 %v341
    %786 = vmatprep.subr.mxu0 0.0
    %787 = vmatpush1.msra.mxu0 0.0
    %788 = vmatprep.subr.mxu0 0.0
    %789 = vmatpush1.msra.mxu0 0.0
    %790 = vmatprep.subr.mxu0 0.0
    %791 = vmatpush1.msra.mxu0 0.0
    %792 = vmatprep.subr.mxu0 0.0
    %793 = vmatpush1.msra.mxu0 0.0
    %794 = vmatprep.subr.mxu0 0.0
    %795 = vmatpush1.msra.mxu0 0.0
    %796 = vmatprep.subr.mxu0 0.0
    %797 = vmatpush1.msra.mxu0 0.0
    %798 = vmatprep.subr.mxu0 0.0
    %799 = vmatpush1.msra.mxu0 0.0
    %800 = vmatprep.subr.mxu0 0.0
    %801 = vmatpush1.msra.mxu0 0.0
    %802 = vmatprep.subr.mxu0 0.0
    %803 = vmatpush1.msra.mxu0 0.0
    %804 = vmatprep.subr.mxu0 0.0
    %805 = vmatpush1.msra.mxu0 0.0
    %806 = vmatprep.subr.mxu0 0.0
    %807 = vmatpush1.msra.mxu0 0.0
    %808 = vmatprep.subr.mxu0 0.0
    %809 = vmatpush1.msra.mxu0 0.0
    %810 = vmatprep.subr.mxu0 0.0
    %811 = vmatpush1.msra.mxu0 0.0
    %812 = vmatprep.subr.mxu0 0.0
    %813 = vmatpush1.msra.mxu0 0.0
    %814 = vmatprep.subr.mxu0 0.0
    %815 = vmatpush1.msra.mxu0 0.0
    %816 = vmatprep.subr.mxu0 0.0
    %817 = vmatpush1.msra.mxu0 0.0
    %818 = vmatprep.subr.mxu0 0.0
    %819 = vmatpush1.msra.mxu0 0.0
    %820 = vmatprep.subr.mxu0 0.0
    %821 = vmatpush1.msra.mxu0 0.0
    %822 = vmatprep.subr.mxu0 0.0
    %823 = vmatpush1.msra.mxu0 0.0
    %824 = vmatprep.subr.mxu0 0.0
    %825 = vmatpush1.msra.mxu0 0.0
    %826 = vmatprep.subr.mxu0 0.0
    %827 = vmatpush1.msra.mxu0 0.0
    %828 = vmatprep.subr.mxu0 0.0
    %829 = vmatpush1.msra.mxu0 0.0
    %830 = vmatprep.subr.mxu0 0.0
    %831 = vmatpush1.msra.mxu0 0.0
    %832 = vmatprep.subr.mxu0 0.0
    %833 = vmatpush1.msra.mxu0 0.0
    %834 = vmatprep.subr.mxu0 0.0
    %835 = vmatpush1.msra.mxu0 0.0
    %836 = vmatprep.subr.mxu0 0.0
    %837 = vmatpush1.msra.mxu0 0.0
    %838 = vmatprep.subr.mxu0 0.0
    %839 = vmatpush1.msra.mxu0 0.0
    %840 = vmatprep.subr.mxu0 0.0
    %841 = vmatpush1.msra.mxu0 0.0
    %842 = vmatprep.subr.mxu0 0.0
    %843 = vmatpush1.msra.mxu0 0.0
    %844 = vmatprep.subr.mxu0 0.0
    %845 = vmatpush1.msra.mxu0 0.0
    %846 = vmatprep.subr.mxu0 0.0
    %847 = vmatpush1.msra.mxu0 0.0
    %848 = vmatprep.mubr.f32.mxu0 0.0
    %849 = vmatmul.mubr.f32.gmra.mrb[0].mxu0 %v782
    %v850 = vpop.f32.mrb[0].mxu0
    %v851 = vadd.f32 0.0, %v850
    %v852 = vpop.f32.mrb[0].mxu0
    %853 = vdwg.mxu0
    %v855 = vsel %vm659, %v706, 0
    %857 = vmatprep.subr.mxu0 0.0
    %858 = vmatpush1.msra.mxu0 %v346
    %859 = vmatprep.subr.mxu0 0.0
    %860 = vmatpush1.msra.mxu0 0.0
    %861 = vmatprep.subr.mxu0 0.0
    %862 = vmatpush1.msra.mxu0 0.0
    %863 = vmatprep.subr.mxu0 0.0
    %864 = vmatpush1.msra.mxu0 0.0
    %865 = vmatprep.subr.mxu0 0.0
    %866 = vmatpush1.msra.mxu0 0.0
    %867 = vmatprep.subr.mxu0 0.0
    %868 = vmatpush1.msra.mxu0 0.0
    %869 = vmatprep.subr.mxu0 0.0
    %870 = vmatpush1.msra.mxu0 0.0
    %871 = vmatprep.subr.mxu0 0.0
    %872 = vmatpush1.msra.mxu0 0.0
    %873 = vmatprep.subr.mxu0 0.0
    %874 = vmatpush1.msra.mxu0 0.0
    %875 = vmatprep.subr.mxu0 0.0
    %876 = vmatpush1.msra.mxu0 0.0
    %877 = vmatprep.subr.mxu0 0.0
    %878 = vmatpush1.msra.mxu0 0.0
    %879 = vmatprep.subr.mxu0 0.0
    %880 = vmatpush1.msra.mxu0 0.0
    %881 = vmatprep.subr.mxu0 0.0
    %882 = vmatpush1.msra.mxu0 0.0
    %883 = vmatprep.subr.mxu0 0.0
    %884 = vmatpush1.msra.mxu0 0.0
    %885 = vmatprep.subr.mxu0 0.0
    %886 = vmatpush1.msra.mxu0 0.0
    %887 = vmatprep.subr.mxu0 0.0
    %888 = vmatpush1.msra.mxu0 0.0
    %889 = vmatprep.subr.mxu0 0.0
    %890 = vmatpush1.msra.mxu0 0.0
    %891 = vmatprep.subr.mxu0 0.0
    %892 = vmatpush1.msra.mxu0 0.0
    %893 = vmatprep.subr.mxu0 0.0
    %894 = vmatpush1.msra.mxu0 0.0
    %895 = vmatprep.subr.mxu0 0.0
    %896 = vmatpush1.msra.mxu0 0.0
    %897 = vmatprep.subr.mxu0 0.0
    %898 = vmatpush1.msra.mxu0 0.0
    %899 = vmatprep.subr.mxu0 0.0
    %900 = vmatpush1.msra.mxu0 0.0
    %901 = vmatprep.subr.mxu0 0.0
    %902 = vmatpush1.msra.mxu0 0.0
    %903 = vmatprep.subr.mxu0 0.0
    %904 = vmatpush1.msra.mxu0 0.0
    %905 = vmatprep.subr.mxu0 0.0
    %906 = vmatpush1.msra.mxu0 0.0
    %907 = vmatprep.subr.mxu0 0.0
    %908 = vmatpush1.msra.mxu0 0.0
    %909 = vmatprep.subr.mxu0 0.0
    %910 = vmatpush1.msra.mxu0 0.0
    %911 = vmatprep.subr.mxu0 0.0
    %912 = vmatpush1.msra.mxu0 0.0
    %913 = vmatprep.subr.mxu0 0.0
    %914 = vmatpush1.msra.mxu0 0.0
    %915 = vmatprep.subr.mxu0 0.0
    %916 = vmatpush1.msra.mxu0 0.0
    %917 = vmatprep.subr.mxu0 0.0
    %918 = vmatpush1.msra.mxu0 0.0
    %919 = vmatprep.subr.mxu0 0.0
    %920 = vmatpush1.msra.mxu0 0.0
    %921 = vmatprep.mubr.f32.mxu0 0.0
    %922 = vmatmul.mubr.f32.gmra.mrb[0].mxu0 %v855
    %v923 = vpop.f32.mrb[0].mxu0
    %v924 = vadd.f32 0.0, %v923
    %v925 = vpop.f32.mrb[0].mxu0
    %926 = vdwg.mxu0
    %v928 = vsel %vm659, %v707, 0
    %930 = vmatprep.subr.mxu0 0.0
    %931 = vmatpush1.msra.mxu0 %v351
    %932 = vmatprep.subr.mxu0 0.0
    %933 = vmatpush1.msra.mxu0 0.0
    %934 = vmatprep.subr.mxu0 0.0
    %935 = vmatpush1.msra.mxu0 0.0
    %936 = vmatprep.subr.mxu0 0.0
    %937 = vmatpush1.msra.mxu0 0.0
    %938 = vmatprep.subr.mxu0 0.0
    %939 = vmatpush1.msra.mxu0 0.0
    %940 = vmatprep.subr.mxu0 0.0
    %941 = vmatpush1.msra.mxu0 0.0
    %942 = vmatprep.subr.mxu0 0.0
    %943 = vmatpush1.msra.mxu0 0.0
    %944 = vmatprep.subr.mxu0 0.0
    %945 = vmatpush1.msra.mxu0 0.0
    %946 = vmatprep.subr.mxu0 0.0
    %947 = vmatpush1.msra.mxu0 0.0
    %948 = vmatprep.subr.mxu0 0.0
    %949 = vmatpush1.msra.mxu0 0.0
    %950 = vmatprep.subr.mxu0 0.0
    %951 = vmatpush1.msra.mxu0 0.0
    %952 = vmatprep.subr.mxu0 0.0
    %953 = vmatpush1.msra.mxu0 0.0
    %954 = vmatprep.subr.mxu0 0.0
    %955 = vmatpush1.msra.mxu0 0.0
    %956 = vmatprep.subr.mxu0 0.0
    %957 = vmatpush1.msra.mxu0 0.0
    %958 = vmatprep.subr.mxu0 0.0
    %959 = vmatpush1.msra.mxu0 0.0
    %960 = vmatprep.subr.mxu0 0.0
    %961 = vmatpush1.msra.mxu0 0.0
    %962 = vmatprep.subr.mxu0 0.0
    %963 = vmatpush1.msra.mxu0 0.0
    %964 = vmatprep.subr.mxu0 0.0
    %965 = vmatpush1.msra.mxu0 0.0
    %966 = vmatprep.subr.mxu0 0.0
    %967 = vmatpush1.msra.mxu0 0.0
    %968 = vmatprep.subr.mxu0 0.0
    %969 = vmatpush1.msra.mxu0 0.0
    %970 = vmatprep.subr.mxu0 0.0
    %971 = vmatpush1.msra.mxu0 0.0
    %972 = vmatprep.subr.mxu0 0.0
    %973 = vmatpush1.msra.mxu0 0.0
    %974 = vmatprep.subr.mxu0 0.0
    %975 = vmatpush1.msra.mxu0 0.0
    %976 = vmatprep.subr.mxu0 0.0
    %977 = vmatpush1.msra.mxu0 0.0
    %978 = vmatprep.subr.mxu0 0.0
    %979 = vmatpush1.msra.mxu0 0.0
    %980 = vmatprep.subr.mxu0 0.0
    %981 = vmatpush1.msra.mxu0 0.0
    %982 = vmatprep.subr.mxu0 0.0
    %983 = vmatpush1.msra.mxu0 0.0
    %984 = vmatprep.subr.mxu0 0.0
    %985 = vmatpush1.msra.mxu0 0.0
    %986 = vmatprep.subr.mxu0 0.0
    %987 = vmatpush1.msra.mxu0 0.0
    %988 = vmatprep.subr.mxu0 0.0
    %989 = vmatpush1.msra.mxu0 0.0
    %990 = vmatprep.subr.mxu0 0.0
    %991 = vmatpush1.msra.mxu0 0.0
    %992 = vmatprep.subr.mxu0 0.0
    %993 = vmatpush1.msra.mxu0 0.0
    %994 = vmatprep.mubr.f32.mxu0 0.0
    %995 = vmatmul.mubr.f32.gmra.mrb[0].mxu0 %v928
    %v996 = vpop.f32.mrb[0].mxu0
    %v997 = vadd.f32 0.0, %v996
    %v998 = vpop.f32.mrb[0].mxu0
    %999 = vdwg.mxu0
    %1000 = vst.msk [vmem:[#allocation2] sm:$0xff] %vm60, %v778
    %1001 = vst.msk [vmem:[#allocation2 + $0x8] sm:$0xff] %vm60, %v851
    %1002 = vst.msk [vmem:[#allocation2 + $0x10] sm:$0xff] %vm60, %v924
    %1003 = vst.msk [vmem:[#allocation2 + $0x18] sm:$0xff] %vm60, %v997
    %v1004 = vadd.f32 %v778, %v37
    %v1005 = vadd.f32 %v851, %v38
    %v1006 = vadd.f32 %v924, %v39
    %v1007 = vadd.f32 %v997, %v40
    %1008 = vst.msk [vmem:[#allocation4] sm:$0xff] %vm60, %v1004
    %1009 = vst.msk [vmem:[#allocation4 + $0x8] sm:$0xff] %vm60, %v1005
    %1010 = vst.msk [vmem:[#allocation4 + $0x10] sm:$0xff] %vm60, %v1006
    %1011 = vst.msk [vmem:[#allocation4 + $0x18] sm:$0xff] %vm60, %v1007
    // Predicated region
    $region34: #{tpu_custom_call.1} parent=1 // pred_check
      _
    $region35: #{tpu_custom_call.1} parent=1 // pred_check_branch
      %1013 = sbr.rel (0) target = $region37
    $region36: #{tpu_custom_call.1} parent=1 // pred_region
      %s1015 = ssub.s32 512, 512
      %1016 = vsyncadd [#allocation3], %s1015
      %s1017 = sshll.u32 [#allocation2], 4
      %s1018 = int_to_ptr.vmem [resolvable:$true] %s1017
      %1023 = dma.vmem_to_hbm [thread:$0]  %s1018, 512, %s8, [#allocation3], 128, 128, 8
    $region37: #{tpu_custom_call.1} parent=1 // pred_fallthru
      _
    // Predicated region
    $region38: #{tpu_custom_call.1} parent=1 // pred_check
      _
    $region39: #{tpu_custom_call.1} parent=1 // pred_check_branch
      %1025 = sbr.rel (0) target = $region41
    $region40: #{tpu_custom_call.1} parent=1 // pred_region
      %s1027 = ssub.s32 512, 512
      %1028 = vsyncadd [#allocation5], %s1027
      %s1029 = sshll.u32 [#allocation4], 4
      %s1030 = int_to_ptr.vmem [resolvable:$true] %s1029
      %1035 = dma.vmem_to_hbm [thread:$0]  %s1030, 512, %s9, [#allocation5], 128, 128, 8
    $region41: #{tpu_custom_call.1} parent=1 // pred_fallthru
      _
    // Predicated region
    $region42: #{tpu_custom_call.1} parent=1 // pred_check
      _
    $region43: #{tpu_custom_call.1} parent=1 // pred_check_branch
      %1037 = sbr.rel (0) target = $region45
    $region44: #{tpu_custom_call.1} parent=1 // pred_region
      %1038 = dma.done [#allocation3], 512
    $region45: #{tpu_custom_call.1} parent=1 // pred_fallthru
      _
    // Predicated region
    $region46: #{tpu_custom_call.1} parent=1 // pred_check
      _
    $region47: #{tpu_custom_call.1} parent=1 // pred_check_branch
      %1040 = sbr.rel (0) target = $region49
    $region48: #{tpu_custom_call.1} parent=1 // pred_region
      %1041 = dma.done [#allocation5], 512
    $region49: #{tpu_custom_call.1} parent=1 // pred_fallthru
      _
    %1042 = vsyncpa [#allocation3], 1
    %1043 = vsyncpa [#allocation5], 1

// kernel: tpu_custom_call.1
$region0: #{tpu_custom_call.1}
  #allocation0 [shape = 'u32[]', space=smem, size = 0x4, offset = 0x4, fixed_abs, tag = 'smem constant byte address 0x4 - core index']
  #allocation1 [shape = 'u32[144,128]{1,0:T(1,128)}', space=vmem, size = 0x12000, scoped, tag = 'internal scratch']
  %s0 = inlined_call_operand.vmem [shape: f32[4,8,32], index: 0, kind: input, shape index: {}]
  %s1 = inlined_call_operand.vmem [shape: f32[4,8,32], index: 1, kind: input, shape index: {}]
  %s2 = inlined_call_operand.vmem [shape: f32[32,16], index: 2, kind: input, shape index: {}]
  %s3 = inlined_call_operand.vmem [shape: f32[32,16], index: 3, kind: input, shape index: {}]
  %s4 = inlined_call_operand.vmem [shape: f32[32,32], index: 4, kind: input, shape index: {}]
  %s5 = inlined_call_operand.vmem [shape: f32[1,16], index: 5, kind: input, shape index: {}]
  %s6 = inlined_call_operand.vmem [shape: f32[1,16], index: 6, kind: input, shape index: {}]
  %s7 = inlined_call_operand.vmem [shape: f32[1,32], index: 7, kind: input, shape index: {}]
  %s8 = inlined_call_operand.hbm [shape: f32[4,8,32], index: 8, kind: output, shape index: {0}]
  %s9 = inlined_call_operand.hbm [shape: f32[4,8,32], index: 9, kind: output, shape index: {1}]
  %10 = xla_tuple %s8, %s9
  %s11 = sld [smem:[#allocation0]]
  $region50: #{tpu_custom_call.1} parent=0
    _
  %s13 = ssub.s32 1, %s11
  %s14 = scalar_select 0, %s13, %s11
  $region1: #{tpu_custom_call.1} parent=0
    #allocation2 [shape = 'u8[16384]{0}', space=vmem, size = 0x4000, scoped, tag = 'output window, operand 0, single buffered']
    #allocation3 [shape = 's32[1]{0}', space=sflag, size = 0x4, scoped, tag = 'scoped memory for tpu_custom_call.1']
    #allocation4 [shape = 'u8[16384]{0}', space=vmem, size = 0x4000, scoped, tag = 'output window, operand 1, single buffered']
    #allocation5 [shape = 's32[1]{0}', space=sflag, size = 0x4, scoped, tag = 'scoped memory for tpu_custom_call.1']
    %15 = vsyncpa [#allocation3], 0
    %16 = vsyncpa [#allocation5], 0
    // Predicated region
    $region2: #{tpu_custom_call.1} parent=1 // pred_check
      _
    $region3: #{tpu_custom_call.1} parent=1 // pred_check_branch
      %18 = sbr.rel (0) target = $region5
    $region4: #{tpu_custom_call.1} parent=1 // pred_region
      _
    $region5: #{tpu_custom_call.1} parent=1 // pred_fallthru
      _
    // Predicated region
    $region6: #{tpu_custom_call.1} parent=1 // pred_check
      _
    $region7: #{tpu_custom_call.1} parent=1 // pred_check_branch
      %20 = sbr.rel (0) target = $region9
    $region8: #{tpu_custom_call.1} parent=1 // pred_region
      _
    $region9: #{tpu_custom_call.1} parent=1 // pred_fallthru
      _
    // Predicated region
    $region10: #{tpu_custom_call.1} parent=1 // pred_check
      _
    $region11: #{tpu_custom_call.1} parent=1 // pred_check_branch
      %22 = sbr.rel (0) target = $region13
    $region12: #{tpu_custom_call.1} parent=1 // pred_region
      _
    $region13: #{tpu_custom_call.1} parent=1 // pred_fallthru
      _
    // Predicated region
    $region14: #{tpu_custom_call.1} parent=1 // pred_check
      _
    $region15: #{tpu_custom_call.1} parent=1 // pred_check_branch
      %24 = sbr.rel (0) target = $region17
    $region16: #{tpu_custom_call.1} parent=1 // pred_region
      _
    $region17: #{tpu_custom_call.1} parent=1 // pred_fallthru
      _
    // Predicated region
    $region18: #{tpu_custom_call.1} parent=1 // pred_check
      _
    $region19: #{tpu_custom_call.1} parent=1 // pred_check_branch
      %26 = sbr.rel (0) target = $region21
    $region20: #{tpu_custom_call.1} parent=1 // pred_region
      _
    $region21: #{tpu_custom_call.1} parent=1 // pred_fallthru
      _
    // Predicated region
    $region22: #{tpu_custom_call.1} parent=1 // pred_check
      _
    $region23: #{tpu_custom_call.1} parent=1 // pred_check_branch
      %28 = sbr.rel (0) target = $region25
    $region24: #{tpu_custom_call.1} parent=1 // pred_region
      _
    $region25: #{tpu_custom_call.1} parent=1 // pred_fallthru
      _
    // Predicated region
    $region26: #{tpu_custom_call.1} parent=1 // pred_check
      _
    $region27: #{tpu_custom_call.1} parent=1 // pred_check_branch
      %30 = sbr.rel (0) target = $region29
    $region28: #{tpu_custom_call.1} parent=1 // pred_region
      _
    $region29: #{tpu_custom_call.1} parent=1 // pred_fallthru
      _
    // Predicated region
    $region30: #{tpu_custom_call.1} parent=1 // pred_check
      _
    $region31: #{tpu_custom_call.1} parent=1 // pred_check_branch
      %32 = sbr.rel (0) target = $region33
    $region32: #{tpu_custom_call.1} parent=1 // pred_region
      _
    $region33: #{tpu_custom_call.1} parent=1 // pred_fallthru
      _
    %v33 = vld [vmem:[%s0] sm:$0xff]
    %v34 = vld [vmem:[%s0 + $0x8] sm:$0xff]
    %v35 = vld [vmem:[%s0 + $0x10] sm:$0xff]
    %v36 = vld [vmem:[%s0 + $0x18] sm:$0xff]
    %v37 = vld [vmem:[%s1] sm:$0xff]
    %v38 = vld [vmem:[%s1 + $0x8] sm:$0xff]
    %v39 = vld [vmem:[%s1 + $0x10] sm:$0xff]
    %v40 = vld [vmem:[%s1 + $0x18] sm:$0xff]
    %v41 = vld [vmem:[%s2] sm:$0xff]
    %v42 = vld [vmem:[%s2 + $0x8] sm:$0xff]
    %v43 = vld [vmem:[%s2 + $0x10] sm:$0xff]
    %v44 = vld [vmem:[%s2 + $0x18] sm:$0xff]
    %v45 = vld [vmem:[%s3] sm:$0xff]
    %v46 = vld [vmem:[%s3 + $0x8] sm:$0xff]
    %v47 = vld [vmem:[%s3 + $0x10] sm:$0xff]
    %v48 = vld [vmem:[%s3 + $0x18] sm:$0xff]
    %v49 = vld [vmem:[%s4] sm:$0xff]
    %v50 = vld [vmem:[%s4 + $0x8] sm:$0xff]
    %v51 = vld [vmem:[%s4 + $0x10] sm:$0xff]
    %v52 = vld [vmem:[%s4 + $0x18] sm:$0xff]
    %v53 = vld [vmem:[%s5] sm:$0x1]
    %v55 = vlaneseq
    %v56 = vshrl.u32 %v55, 7
    %v57 = vsub.s32 0, %v56
    %v58 = vrot.slane %v53, %v57
    %vm60 = vcmask 261120
    %v62 = vsel %vm60, %v33, 0
    %v65 = vsel %vm60, %v34, 0
    %v68 = vsel %vm60, %v35, 0
    %v71 = vsel %vm60, %v36, 0
    %73 = vmatprep.subr.mxu0 0.0
    %74 = vmatpush1.msra.mxu0 %v41
    %75 = vmatprep.subr.mxu0 0.0
    %76 = vmatpush1.msra.mxu0 %v42
    %77 = vmatprep.subr.mxu0 0.0
    %78 = vmatpush1.msra.mxu0 %v43
    %79 = vmatprep.subr.mxu0 0.0
    %80 = vmatpush1.msra.mxu0 %v44
    %81 = vmatprep.subr.mxu0 0.0
    %82 = vmatpush1.msra.mxu0 0.0
    %83 = vmatprep.subr.mxu0 0.0
    %84 = vmatpush1.msra.mxu0 0.0
    %85 = vmatprep.subr.mxu0 0.0
    %86 = vmatpush1.msra.mxu0 0.0
    %87 = vmatprep.subr.mxu0 0.0
    %88 = vmatpush1.msra.mxu0 0.0
    %89 = vmatprep.subr.mxu0 0.0
    %90 = vmatpush1.msra.mxu0 0.0
    %91 = vmatprep.subr.mxu0 0.0
    %92 = vmatpush1.msra.mxu0 0.0
    %93 = vmatprep.subr.mxu0 0.0
    %94 = vmatpush1.msra.mxu0 0.0
    %95 = vmatprep.subr.mxu0 0.0
    %96 = vmatpush1.msra.mxu0 0.0
    %97 = vmatprep.subr.mxu0 0.0
    %98 = vmatpush1.msra.mxu0 0.0
    %99 = vmatprep.subr.mxu0 0.0
    %100 = vmatpush1.msra.mxu0 0.0
    %101 = vmatprep.subr.mxu0 0.0
    %102 = vmatpush1.msra.mxu0 0.0
    %103 = vmatprep.subr.mxu0 0.0
    %104 = vmatpush1.msra.mxu0 0.0
    %105 = vmatprep.subr.mxu0 0.0
    %106 = vmatpush1.msra.mxu0 0.0
    %107 = vmatprep.subr.mxu0 0.0
    %108 = vmatpush1.msra.mxu0 0.0
    %109 = vmatprep.subr.mxu0 0.0
    %110 = vmatpush1.msra.mxu0 0.0
    %111 = vmatprep.subr.mxu0 0.0
    %112 = vmatpush1.msra.mxu0 0.0
    %113 = vmatprep.subr.mxu0 0.0
    %114 = vmatpush1.msra.mxu0 0.0
    %115 = vmatprep.subr.mxu0 0.0
    %116 = vmatpush1.msra.mxu0 0.0
    %117 = vmatprep.subr.mxu0 0.0
    %118 = vmatpush1.msra.mxu0 0.0
    %119 = vmatprep.subr.mxu0 0.0
    %120 = vmatpush1.msra.mxu0 0.0
    %121 = vmatprep.subr.mxu0 0.0
    %122 = vmatpush1.msra.mxu0 0.0
    %123 = vmatprep.subr.mxu0 0.0
    %124 = vmatpush1.msra.mxu0 0.0
    %125 = vmatprep.subr.mxu0 0.0
    %126 = vmatpush1.msra.mxu0 0.0
    %127 = vmatprep.subr.mxu0 0.0
    %128 = vmatpush1.msra.mxu0 0.0
    %129 = vmatprep.subr.mxu0 0.0
    %130 = vmatpush1.msra.mxu0 0.0
    %131 = vmatprep.subr.mxu0 0.0
    %132 = vmatpush1.msra.mxu0 0.0
    %133 = vmatprep.subr.mxu0 0.0
    %134 = vmatpush1.msra.mxu0 0.0
    %135 = vmatprep.subr.mxu0 0.0
    %136 = vmatpush1.msra.mxu0 0.0
    %137 = vmatprep.mubr.f32.mxu0 0.0
    %138 = vmatmul.mubr.f32.gmra.mrb[0].mxu0 %v62
    %v139 = vpop.f32.mrb[0].mxu0
    %v140 = vadd.f32 %v58, %v139
    %v141 = vpop.f32.mrb[0].mxu0
    %142 = vmatprep.mubr.f32.mxu0 0.0
    %143 = vmatmul.mubr.f32.gmra.mrb[0].mxu0 %v65
    %v144 = vpop.f32.mrb[0].mxu0
    %v145 = vadd.f32 %v58, %v144
    %v146 = vpop.f32.mrb[0].mxu0
    %147 = vmatprep.mubr.f32.mxu0 0.0
    %148 = vmatmul.mubr.f32.gmra.mrb[0].mxu0 %v68
    %v149 = vpop.f32.mrb[0].mxu0
    %v150 = vadd.f32 %v58, %v149
    %v151 = vpop.f32.mrb[0].mxu0
    %152 = vmatprep.mubr.f32.mxu0 0.0
    %153 = vmatmul.mubr.f32.gmra.mrb[0].mxu0 %v71
    %v154 = vpop.f32.mrb[0].mxu0
    %v155 = vadd.f32 %v58, %v154
    %v156 = vpop.f32.mrb[0].mxu0
    %157 = vdwg.mxu0
    %v158 = vld [vmem:[%s6] sm:$0x1]
    %v160 = vlaneseq
    %v161 = vshrl.u32 %v160, 7
    %v162 = vsub.s32 0, %v161
    %v163 = vrot.slane %v158, %v162
    %v166 = vsel %vm60, %v37, 0
    %v169 = vsel %vm60, %v38, 0
    %v172 = vsel %vm60, %v39, 0
    %v175 = vsel %vm60, %v40, 0
    %177 = vmatprep.subr.mxu0 0.0
    %178 = vmatpush1.msra.mxu0 %v45
    %179 = vmatprep.subr.mxu0 0.0
    %180 = vmatpush1.msra.mxu0 %v46
    %181 = vmatprep.subr.mxu0 0.0
    %182 = vmatpush1.msra.mxu0 %v47
    %183 = vmatprep.subr.mxu0 0.0
    %184 = vmatpush1.msra.mxu0 %v48
    %185 = vmatprep.subr.mxu0 0.0
    %186 = vmatpush1.msra.mxu0 0.0
    %187 = vmatprep.subr.mxu0 0.0
    %188 = vmatpush1.msra.mxu0 0.0
    %189 = vmatprep.subr.mxu0 0.0
    %190 = vmatpush1.msra.mxu0 0.0
    %191 = vmatprep.subr.mxu0 0.0
    %192 = vmatpush1.msra.mxu0 0.0
    %193 = vmatprep.subr.mxu0 0.0
    %194 = vmatpush1.msra.mxu0 0.0
    %195 = vmatprep.subr.mxu0 0.0
    %196 = vmatpush1.msra.mxu0 0.0
    %197 = vmatprep.subr.mxu0 0.0
    %198 = vmatpush1.msra.mxu0 0.0
    %199 = vmatprep.subr.mxu0 0.0
    %200 = vmatpush1.msra.mxu0 0.0
    %201 = vmatprep.subr.mxu0 0.0
    %202 = vmatpush1.msra.mxu0 0.0
    %203 = vmatprep.subr.mxu0 0.0
    %204 = vmatpush1.msra.mxu0 0.0
    %205 = vmatprep.subr.mxu0 0.0
    %206 = vmatpush1.msra.mxu0 0.0
    %207 = vmatprep.subr.mxu0 0.0
    %208 = vmatpush1.msra.mxu0 0.0
    %209 = vmatprep.subr.mxu0 0.0
    %210 = vmatpush1.msra.mxu0 0.0
    %211 = vmatprep.subr.mxu0 0.0
    %212 = vmatpush1.msra.mxu0 0.0
    %213 = vmatprep.subr.mxu0 0.0
    %214 = vmatpush1.msra.mxu0 0.0
    %215 = vmatprep.subr.mxu0 0.0
    %216 = vmatpush1.msra.mxu0 0.0
    %217 = vmatprep.subr.mxu0 0.0
    %218 = vmatpush1.msra.mxu0 0.0
    %219 = vmatprep.subr.mxu0 0.0
    %220 = vmatpush1.msra.mxu0 0.0
    %221 = vmatprep.subr.mxu0 0.0
    %222 = vmatpush1.msra.mxu0 0.0
    %223 = vmatprep.subr.mxu0 0.0
    %224 = vmatpush1.msra.mxu0 0.0
    %225 = vmatprep.subr.mxu0 0.0
    %226 = vmatpush1.msra.mxu0 0.0
    %227 = vmatprep.subr.mxu0 0.0
    %228 = vmatpush1.msra.mxu0 0.0
    %229 = vmatprep.subr.mxu0 0.0
    %230 = vmatpush1.msra.mxu0 0.0
    %231 = vmatprep.subr.mxu0 0.0
    %232 = vmatpush1.msra.mxu0 0.0
    %233 = vmatprep.subr.mxu0 0.0
    %234 = vmatpush1.msra.mxu0 0.0
    %235 = vmatprep.subr.mxu0 0.0
    %236 = vmatpush1.msra.mxu0 0.0
    %237 = vmatprep.subr.mxu0 0.0
    %238 = vmatpush1.msra.mxu0 0.0
    %239 = vmatprep.subr.mxu0 0.0
    %240 = vmatpush1.msra.mxu0 0.0
    %241 = vmatprep.mubr.f32.mxu0 0.0
    %242 = vmatmul.mubr.f32.gmra.mrb[0].mxu0 %v166
    %v243 = vpop.f32.mrb[0].mxu0
    %v244 = vadd.f32 %v163, %v243
    %v245 = vpop.f32.mrb[0].mxu0
    %246 = vmatprep.mubr.f32.mxu0 0.0
    %247 = vmatmul.mubr.f32.gmra.mrb[0].mxu0 %v169
    %v248 = vpop.f32.mrb[0].mxu0
    %v249 = vadd.f32 %v163, %v248
    %v250 = vpop.f32.mrb[0].mxu0
    %251 = vmatprep.mubr.f32.mxu0 0.0
    %252 = vmatmul.mubr.f32.gmra.mrb[0].mxu0 %v172
    %v253 = vpop.f32.mrb[0].mxu0
    %v254 = vadd.f32 %v163, %v253
    %v255 = vpop.f32.mrb[0].mxu0
    %256 = vmatprep.mubr.f32.mxu0 0.0
    %257 = vmatmul.mubr.f32.gmra.mrb[0].mxu0 %v175
    %v258 = vpop.f32.mrb[0].mxu0
    %v259 = vadd.f32 %v163, %v258
    %v260 = vpop.f32.mrb[0].mxu0
    %261 = vdwg.mxu0
    %v262 = vld [vmem:[%s7] sm:$0x1]
    %v264 = vlaneseq
    %v265 = vshrl.u32 %v264, 7
    %v266 = vsub.s32 0, %v265
    %v267 = vrot.slane %v262, %v266
    %269 = vmatprep.subr.mxu0 0.0
    %270 = vmatpush1.msra.mxu0 %v49
    %271 = vmatprep.subr.mxu0 0.0
    %272 = vmatpush1.msra.mxu0 %v50
    %273 = vmatprep.subr.mxu0 0.0
    %274 = vmatpush1.msra.mxu0 %v51
    %275 = vmatprep.subr.mxu0 0.0
    %276 = vmatpush1.msra.mxu0 %v52
    %277 = vmatprep.subr.mxu0 0.0
    %278 = vmatpush1.msra.mxu0 0.0
    %279 = vmatprep.subr.mxu0 0.0
    %280 = vmatpush1.msra.mxu0 0.0
    %281 = vmatprep.subr.mxu0 0.0
    %282 = vmatpush1.msra.mxu0 0.0
    %283 = vmatprep.subr.mxu0 0.0
    %284 = vmatpush1.msra.mxu0 0.0
    %285 = vmatprep.subr.mxu0 0.0
    %286 = vmatpush1.msra.mxu0 0.0
    %287 = vmatprep.subr.mxu0 0.0
    %288 = vmatpush1.msra.mxu0 0.0
    %289 = vmatprep.subr.mxu0 0.0
    %290 = vmatpush1.msra.mxu0 0.0
    %291 = vmatprep.subr.mxu0 0.0
    %292 = vmatpush1.msra.mxu0 0.0
    %293 = vmatprep.subr.mxu0 0.0
    %294 = vmatpush1.msra.mxu0 0.0
    %295 = vmatprep.subr.mxu0 0.0
    %296 = vmatpush1.msra.mxu0 0.0
    %297 = vmatprep.subr.mxu0 0.0
    %298 = vmatpush1.msra.mxu0 0.0
    %299 = vmatprep.subr.mxu0 0.0
    %300 = vmatpush1.msra.mxu0 0.0
    %301 = vmatprep.subr.mxu0 0.0
    %302 = vmatpush1.msra.mxu0 0.0
    %303 = vmatprep.subr.mxu0 0.0
    %304 = vmatpush1.msra.mxu0 0.0
    %305 = vmatprep.subr.mxu0 0.0
    %306 = vmatpush1.msra.mxu0 0.0
    %307 = vmatprep.subr.mxu0 0.0
    %308 = vmatpush1.msra.mxu0 0.0
    %309 = vmatprep.subr.mxu0 0.0
    %310 = vmatpush1.msra.mxu0 0.0
    %311 = vmatprep.subr.mxu0 0.0
    %312 = vmatpush1.msra.mxu0 0.0
    %313 = vmatprep.subr.mxu0 0.0
    %314 = vmatpush1.msra.mxu0 0.0
    %315 = vmatprep.subr.mxu0 0.0
    %316 = vmatpush1.msra.mxu0 0.0
    %317 = vmatprep.subr.mxu0 0.0
    %318 = vmatpush1.msra.mxu0 0.0
    %319 = vmatprep.subr.mxu0 0.0
    %320 = vmatpush1.msra.mxu0 0.0
    %321 = vmatprep.subr.mxu0 0.0
    %322 = vmatpush1.msra.mxu0 0.0
    %323 = vmatprep.subr.mxu0 0.0
    %324 = vmatpush1.msra.mxu0 0.0
    %325 = vmatprep.subr.mxu0 0.0
    %326 = vmatpush1.msra.mxu0 0.0
    %327 = vmatprep.subr.mxu0 0.0
    %328 = vmatpush1.msra.mxu0 0.0
    %329 = vmatprep.subr.mxu0 0.0
    %330 = vmatpush1.msra.mxu0 0.0
    %331 = vmatprep.subr.mxu0 0.0
    %332 = vmatpush1.msra.mxu0 0.0
    %333 = vmatprep.mubr.f32.mxu0 0.0
    %334 = vmatmul.mubr.f32.gmra.mrb[0].mxu0 %v166
    %v335 = vpop.f32.mrb[0].mxu0
    %v336 = vadd.f32 %v267, %v335
    %v337 = vpop.f32.mrb[0].mxu0
    %338 = vmatprep.mubr.f32.mxu0 0.0
    %339 = vmatmul.mubr.f32.gmra.mrb[0].mxu0 %v169
    %v340 = vpop.f32.mrb[0].mxu0
    %v341 = vadd.f32 %v267, %v340
    %v342 = vpop.f32.mrb[0].mxu0
    %343 = vmatprep.mubr.f32.mxu0 0.0
    %344 = vmatmul.mubr.f32.gmra.mrb[0].mxu0 %v172
    %v345 = vpop.f32.mrb[0].mxu0
    %v346 = vadd.f32 %v267, %v345
    %v347 = vpop.f32.mrb[0].mxu0
    %348 = vmatprep.mubr.f32.mxu0 0.0
    %349 = vmatmul.mubr.f32.gmra.mrb[0].mxu0 %v175
    %v350 = vpop.f32.mrb[0].mxu0
    %v351 = vadd.f32 %v267, %v350
    %v352 = vpop.f32.mrb[0].mxu0
    %353 = vdwg.mxu0
    %vm354 = vcmask 130048
    %v356 = vsel %vm354, %v140, 0
    %v359 = vsel %vm354, %v244, 0
    %361 = vmatprep.subr.mxu0 0.0
    %362 = vmatpush1.xpose.msra.mxu0 %v359
    %363 = vmatprep.subr.mxu0 0.0
    %364 = vmatpush1.xpose.msra.mxu0 0.0
    %365 = vmatprep.subr.mxu0 0.0
    %366 = vmatpush1.xpose.msra.mxu0 0.0
    %367 = vmatprep.subr.mxu0 0.0
    %368 = vmatpush1.xpose.msra.mxu0 0.0
    %369 = vmatprep.subr.mxu0 0.0
    %370 = vmatpush1.xpose.msra.mxu0 0.0
    %371 = vmatprep.subr.mxu0 0.0
    %372 = vmatpush1.xpose.msra.mxu0 0.0
    %373 = vmatprep.subr.mxu0 0.0
    %374 = vmatpush1.xpose.msra.mxu0 0.0
    %375 = vmatprep.subr.mxu0 0.0
    %376 = vmatpush1.xpose.msra.mxu0 0.0
    %377 = vmatprep.subr.mxu0 0.0
    %378 = vmatpush1.xpose.msra.mxu0 0.0
    %379 = vmatprep.subr.mxu0 0.0
    %380 = vmatpush1.xpose.msra.mxu0 0.0
    %381 = vmatprep.subr.mxu0 0.0
    %382 = vmatpush1.xpose.msra.mxu0 0.0
    %383 = vmatprep.subr.mxu0 0.0
    %384 = vmatpush1.xpose.msra.mxu0 0.0
    %385 = vmatprep.subr.mxu0 0.0
    %386 = vmatpush1.xpose.msra.mxu0 0.0
    %387 = vmatprep.subr.mxu0 0.0
    %388 = vmatpush1.xpose.msra.mxu0 0.0
    %389 = vmatprep.subr.mxu0 0.0
    %390 = vmatpush1.xpose.msra.mxu0 0.0
    %391 = vmatprep.subr.mxu0 0.0
    %392 = vmatpush1.xpose.msra.mxu0 0.0
    %393 = vmatprep.subr.mxu0 0.0
    %394 = vmatpush1.xpose.msra.mxu0 0.0
    %395 = vmatprep.subr.mxu0 0.0
    %396 = vmatpush1.xpose.msra.mxu0 0.0
    %397 = vmatprep.subr.mxu0 0.0
    %398 = vmatpush1.xpose.msra.mxu0 0.0
    %399 = vmatprep.subr.mxu0 0.0
    %400 = vmatpush1.xpose.msra.mxu0 0.0
    %401 = vmatprep.subr.mxu0 0.0
    %402 = vmatpush1.xpose.msra.mxu0 0.0
    %403 = vmatprep.subr.mxu0 0.0
    %404 = vmatpush1.xpose.msra.mxu0 0.0
    %405 = vmatprep.subr.mxu0 0.0
    %406 = vmatpush1.xpose.msra.mxu0 0.0
    %407 = vmatprep.subr.mxu0 0.0
    %408 = vmatpush1.xpose.msra.mxu0 0.0
    %409 = vmatprep.subr.mxu0 0.0
    %410 = vmatpush1.xpose.msra.mxu0 0.0
    %411 = vmatprep.subr.mxu0 0.0
    %412 = vmatpush1.xpose.msra.mxu0 0.0
    %413 = vmatprep.subr.mxu0 0.0
    %414 = vmatpush1.xpose.msra.mxu0 0.0
    %415 = vmatprep.subr.mxu0 0.0
    %416 = vmatpush1.xpose.msra.mxu0 0.0
    %417 = vmatprep.subr.mxu0 0.0
    %418 = vmatpush1.xpose.msra.mxu0 0.0
    %419 = vmatprep.subr.mxu0 0.0
    %420 = vmatpush1.xpose.msra.mxu0 0.0
    %421 = vmatprep.subr.mxu0 0.0
    %422 = vmatpush1.xpose.msra.mxu0 0.0
    %423 = vmatprep.subr.mxu0 0.0
    %424 = vmatpush1.xpose.msra.mxu0 0.0
    %425 = vmatprep.mubr.f32.mxu0 0.0
    %426 = vmatmul.mubr.f32.gmra.mrb[0].mxu0 %v356
    %v427 = vpop.f32.mrb[0].mxu0
    %v428 = vadd.f32 0.0, %v427
    %v429 = vpop.f32.mrb[0].mxu0
    %430 = vdwg.mxu0
    %v432 = vsel %vm354, %v145, 0
    %v435 = vsel %vm354, %v249, 0
    %437 = vmatprep.subr.mxu0 0.0
    %438 = vmatpush1.xpose.msra.mxu0 %v435
    %439 = vmatprep.subr.mxu0 0.0
    %440 = vmatpush1.xpose.msra.mxu0 0.0
    %441 = vmatprep.subr.mxu0 0.0
    %442 = vmatpush1.xpose.msra.mxu0 0.0
    %443 = vmatprep.subr.mxu0 0.0
    %444 = vmatpush1.xpose.msra.mxu0 0.0
    %445 = vmatprep.subr.mxu0 0.0
    %446 = vmatpush1.xpose.msra.mxu0 0.0
    %447 = vmatprep.subr.mxu0 0.0
    %448 = vmatpush1.xpose.msra.mxu0 0.0
    %449 = vmatprep.subr.mxu0 0.0
    %450 = vmatpush1.xpose.msra.mxu0 0.0
    %451 = vmatprep.subr.mxu0 0.0
    %452 = vmatpush1.xpose.msra.mxu0 0.0
    %453 = vmatprep.subr.mxu0 0.0
    %454 = vmatpush1.xpose.msra.mxu0 0.0
    %455 = vmatprep.subr.mxu0 0.0
    %456 = vmatpush1.xpose.msra.mxu0 0.0
    %457 = vmatprep.subr.mxu0 0.0
    %458 = vmatpush1.xpose.msra.mxu0 0.0
    %459 = vmatprep.subr.mxu0 0.0
    %460 = vmatpush1.xpose.msra.mxu0 0.0
    %461 = vmatprep.subr.mxu0 0.0
    %462 = vmatpush1.xpose.msra.mxu0 0.0
    %463 = vmatprep.subr.mxu0 0.0
    %464 = vmatpush1.xpose.msra.mxu0 0.0
    %465 = vmatprep.subr.mxu0 0.0
    %466 = vmatpush1.xpose.msra.mxu0 0.0
    %467 = vmatprep.subr.mxu0 0.0
    %468 = vmatpush1.xpose.msra.mxu0 0.0
    %469 = vmatprep.subr.mxu0 0.0
    %470 = vmatpush1.xpose.msra.mxu0 0.0
    %471 = vmatprep.subr.mxu0 0.0
    %472 = vmatpush1.xpose.msra.mxu0 0.0
    %473 = vmatprep.subr.mxu0 0.0
    %474 = vmatpush1.xpose.msra.mxu0 0.0
    %475 = vmatprep.subr.mxu0 0.0
    %476 = vmatpush1.xpose.msra.mxu0 0.0
    %477 = vmatprep.subr.mxu0 0.0
    %478 = vmatpush1.xpose.msra.mxu0 0.0
    %479 = vmatprep.subr.mxu0 0.0
    %480 = vmatpush1.xpose.msra.mxu0 0.0
    %481 = vmatprep.subr.mxu0 0.0
    %482 = vmatpush1.xpose.msra.mxu0 0.0
    %483 = vmatprep.subr.mxu0 0.0
    %484 = vmatpush1.xpose.msra.mxu0 0.0
    %485 = vmatprep.subr.mxu0 0.0
    %486 = vmatpush1.xpose.msra.mxu0 0.0
    %487 = vmatprep.subr.mxu0 0.0
    %488 = vmatpush1.xpose.msra.mxu0 0.0
    %489 = vmatprep.subr.mxu0 0.0
    %490 = vmatpush1.xpose.msra.mxu0 0.0
    %491 = vmatprep.subr.mxu0 0.0
    %492 = vmatpush1.xpose.msra.mxu0 0.0
    %493 = vmatprep.subr.mxu0 0.0
    %494 = vmatpush1.xpose.msra.mxu0 0.0
    %495 = vmatprep.subr.mxu0 0.0
    %496 = vmatpush1.xpose.msra.mxu0 0.0
    %497 = vmatprep.subr.mxu0 0.0
    %498 = vmatpush1.xpose.msra.mxu0 0.0
    %499 = vmatprep.subr.mxu0 0.0
    %500 = vmatpush1.xpose.msra.mxu0 0.0
    %501 = vmatprep.mubr.f32.mxu0 0.0
    %502 = vmatmul.mubr.f32.gmra.mrb[0].mxu0 %v432
    %v503 = vpop.f32.mrb[0].mxu0
    %v504 = vadd.f32 0.0, %v503
    %v505 = vpop.f32.mrb[0].mxu0
    %506 = vdwg.mxu0
    %v508 = vsel %vm354, %v150, 0
    %v511 = vsel %vm354, %v254, 0
    %513 = vmatprep.subr.mxu0 0.0
    %514 = vmatpush1.xpose.msra.mxu0 %v511
    %515 = vmatprep.subr.mxu0 0.0
    %516 = vmatpush1.xpose.msra.mxu0 0.0
    %517 = vmatprep.subr.mxu0 0.0
    %518 = vmatpush1.xpose.msra.mxu0 0.0
    %519 = vmatprep.subr.mxu0 0.0
    %520 = vmatpush1.xpose.msra.mxu0 0.0
    %521 = vmatprep.subr.mxu0 0.0
    %522 = vmatpush1.xpose.msra.mxu0 0.0
    %523 = vmatprep.subr.mxu0 0.0
    %524 = vmatpush1.xpose.msra.mxu0 0.0
    %525 = vmatprep.subr.mxu0 0.0
    %526 = vmatpush1.xpose.msra.mxu0 0.0
    %527 = vmatprep.subr.mxu0 0.0
    %528 = vmatpush1.xpose.msra.mxu0 0.0
    %529 = vmatprep.subr.mxu0 0.0
    %530 = vmatpush1.xpose.msra.mxu0 0.0
    %531 = vmatprep.subr.mxu0 0.0
    %532 = vmatpush1.xpose.msra.mxu0 0.0
    %533 = vmatprep.subr.mxu0 0.0
    %534 = vmatpush1.xpose.msra.mxu0 0.0
    %535 = vmatprep.subr.mxu0 0.0
    %536 = vmatpush1.xpose.msra.mxu0 0.0
    %537 = vmatprep.subr.mxu0 0.0
    %538 = vmatpush1.xpose.msra.mxu0 0.0
    %539 = vmatprep.subr.mxu0 0.0
    %540 = vmatpush1.xpose.msra.mxu0 0.0
    %541 = vmatprep.subr.mxu0 0.0
    %542 = vmatpush1.xpose.msra.mxu0 0.0
    %543 = vmatprep.subr.mxu0 0.0
    %544 = vmatpush1.xpose.msra.mxu0 0.0
    %545 = vmatprep.subr.mxu0 0.0
    %546 = vmatpush1.xpose.msra.mxu0 0.0
    %547 = vmatprep.subr.mxu0 0.0
    %548 = vmatpush1.xpose.msra.mxu0 0.0
    %549 = vmatprep.subr.mxu0 0.0
    %550 = vmatpush1.xpose.msra.mxu0 0.0
    %551 = vmatprep.subr.mxu0 0.0
    %552 = vmatpush1.xpose.msra.mxu0 0.0
    %553 = vmatprep.subr.mxu0 0.0
    %554 = vmatpush1.xpose.msra.mxu0 0.0
    %555 = vmatprep.subr.mxu0 0.0
    %556 = vmatpush1.xpose.msra.mxu0 0.0
    %557 = vmatprep.subr.mxu0 0.0
    %558 = vmatpush1.xpose.msra.mxu0 0.0
    %559 = vmatprep.subr.mxu0 0.0
    %560 = vmatpush1.xpose.msra.mxu0 0.0
    %561 = vmatprep.subr.mxu0 0.0
    %562 = vmatpush1.xpose.msra.mxu0 0.0
    %563 = vmatprep.subr.mxu0 0.0
    %564 = vmatpush1.xpose.msra.mxu0 0.0
    %565 = vmatprep.subr.mxu0 0.0
    %566 = vmatpush1.xpose.msra.mxu0 0.0
    %567 = vmatprep.subr.mxu0 0.0
    %568 = vmatpush1.xpose.msra.mxu0 0.0
    %569 = vmatprep.subr.mxu0 0.0
    %570 = vmatpush1.xpose.msra.mxu0 0.0
    %571 = vmatprep.subr.mxu0 0.0
    %572 = vmatpush1.xpose.msra.mxu0 0.0
    %573 = vmatprep.subr.mxu0 0.0
    %574 = vmatpush1.xpose.msra.mxu0 0.0
    %575 = vmatprep.subr.mxu0 0.0
    %576 = vmatpush1.xpose.msra.mxu0 0.0
    %577 = vmatprep.mubr.f32.mxu0 0.0
    %578 = vmatmul.mubr.f32.gmra.mrb[0].mxu0 %v508
    %v579 = vpop.f32.mrb[0].mxu0
    %v580 = vadd.f32 0.0, %v579
    %v581 = vpop.f32.mrb[0].mxu0
    %582 = vdwg.mxu0
    %v584 = vsel %vm354, %v155, 0
    %v587 = vsel %vm354, %v259, 0
    %589 = vmatprep.subr.mxu0 0.0
    %590 = vmatpush1.xpose.msra.mxu0 %v587
    %591 = vmatprep.subr.mxu0 0.0
    %592 = vmatpush1.xpose.msra.mxu0 0.0
    %593 = vmatprep.subr.mxu0 0.0
    %594 = vmatpush1.xpose.msra.mxu0 0.0
    %595 = vmatprep.subr.mxu0 0.0
    %596 = vmatpush1.xpose.msra.mxu0 0.0
    %597 = vmatprep.subr.mxu0 0.0
    %598 = vmatpush1.xpose.msra.mxu0 0.0
    %599 = vmatprep.subr.mxu0 0.0
    %600 = vmatpush1.xpose.msra.mxu0 0.0
    %601 = vmatprep.subr.mxu0 0.0
    %602 = vmatpush1.xpose.msra.mxu0 0.0
    %603 = vmatprep.subr.mxu0 0.0
    %604 = vmatpush1.xpose.msra.mxu0 0.0
    %605 = vmatprep.subr.mxu0 0.0
    %606 = vmatpush1.xpose.msra.mxu0 0.0
    %607 = vmatprep.subr.mxu0 0.0
    %608 = vmatpush1.xpose.msra.mxu0 0.0
    %609 = vmatprep.subr.mxu0 0.0
    %610 = vmatpush1.xpose.msra.mxu0 0.0
    %611 = vmatprep.subr.mxu0 0.0
    %612 = vmatpush1.xpose.msra.mxu0 0.0
    %613 = vmatprep.subr.mxu0 0.0
    %614 = vmatpush1.xpose.msra.mxu0 0.0
    %615 = vmatprep.subr.mxu0 0.0
    %616 = vmatpush1.xpose.msra.mxu0 0.0
    %617 = vmatprep.subr.mxu0 0.0
    %618 = vmatpush1.xpose.msra.mxu0 0.0
    %619 = vmatprep.subr.mxu0 0.0
    %620 = vmatpush1.xpose.msra.mxu0 0.0
    %621 = vmatprep.subr.mxu0 0.0
    %622 = vmatpush1.xpose.msra.mxu0 0.0
    %623 = vmatprep.subr.mxu0 0.0
    %624 = vmatpush1.xpose.msra.mxu0 0.0
    %625 = vmatprep.subr.mxu0 0.0
    %626 = vmatpush1.xpose.msra.mxu0 0.0
    %627 = vmatprep.subr.mxu0 0.0
    %628 = vmatpush1.xpose.msra.mxu0 0.0
    %629 = vmatprep.subr.mxu0 0.0
    %630 = vmatpush1.xpose.msra.mxu0 0.0
    %631 = vmatprep.subr.mxu0 0.0
    %632 = vmatpush1.xpose.msra.mxu0 0.0
    %633 = vmatprep.subr.mxu0 0.0
    %634 = vmatpush1.xpose.msra.mxu0 0.0
    %635 = vmatprep.subr.mxu0 0.0
    %636 = vmatpush1.xpose.msra.mxu0 0.0
    %637 = vmatprep.subr.mxu0 0.0
    %638 = vmatpush1.xpose.msra.mxu0 0.0
    %639 = vmatprep.subr.mxu0 0.0
    %640 = vmatpush1.xpose.msra.mxu0 0.0
    %641 = vmatprep.subr.mxu0 0.0
    %642 = vmatpush1.xpose.msra.mxu0 0.0
    %643 = vmatprep.subr.mxu0 0.0
    %644 = vmatpush1.xpose.msra.mxu0 0.0
    %645 = vmatprep.subr.mxu0 0.0
    %646 = vmatpush1.xpose.msra.mxu0 0.0
    %647 = vmatprep.subr.mxu0 0.0
    %648 = vmatpush1.xpose.msra.mxu0 0.0
    %649 = vmatprep.subr.mxu0 0.0
    %650 = vmatpush1.xpose.msra.mxu0 0.0
    %651 = vmatprep.subr.mxu0 0.0
    %652 = vmatpush1.xpose.msra.mxu0 0.0
    %653 = vmatprep.mubr.f32.mxu0 0.0
    %654 = vmatmul.mubr.f32.gmra.mrb[0].mxu0 %v584
    %v655 = vpop.f32.mrb[0].mxu0
    %v656 = vadd.f32 0.0, %v655
    %v657 = vpop.f32.mrb[0].mxu0
    %658 = vdwg.mxu0
    %vm659 = vcmask 64512
    %v660 = vsel %vm659, %v428, -inf
    %661 = vmax.xlane.f32.xlu0 %v660
    %v662 = vpop.xlane.xlu0 %661
    %v663 = vsel %vm659, %v504, -inf
    %664 = vmax.xlane.f32.xlu0 %v663
    %v665 = vpop.xlane.xlu0 %664
    %v666 = vsel %vm659, %v580, -inf
    %667 = vmax.xlane.f32.xlu0 %v666
    %v668 = vpop.xlane.xlu0 %667
    %v669 = vsel %vm659, %v656, -inf
    %670 = vmax.xlane.f32.xlu0 %v669
    %v671 = vpop.xlane.xlu0 %670
    %v672 = vsub.f32 %v428, %v662
    %v673 = vsub.f32 %v504, %v665
    %v674 = vsub.f32 %v580, %v668
    %v675 = vsub.f32 %v656, %v671
    %v676 = vmul.f32 %v672, 1.442695
    %v677 = vpow.pop %v676
    %v678 = vmul.f32 %v673, 1.442695
    %v679 = vpow.pop %v678
    %v680 = vmul.f32 %v674, 1.442695
    %v681 = vpow.pop %v680
    %v682 = vmul.f32 %v675, 1.442695
    %v683 = vpow.pop %v682
    %v684 = vsel %vm659, %v677, 0.0
    %685 = vadd.xlane.f32.xlu0 %v684
    %v686 = vpop.xlane.xlu0 %685
    %v687 = vsel %vm659, %v679, 0.0
    %688 = vadd.xlane.f32.xlu0 %v687
    %v689 = vpop.xlane.xlu0 %688
    %v690 = vsel %vm659, %v681, 0.0
    %691 = vadd.xlane.f32.xlu0 %v690
    %v692 = vpop.xlane.xlu0 %691
    %v693 = vsel %vm659, %v683, 0.0
    %694 = vadd.xlane.f32.xlu0 %v693
    %v695 = vpop.xlane.xlu0 %694
    %v696 = vrcp.pop %v686
    %v697 = vrcp.pop %v689
    %v698 = vrcp.pop %v692
    %v699 = vrcp.pop %v695
    %v700 = vmul.f32 %v696, 0.25
    %v701 = vmul.f32 %v697, 0.25
    %v702 = vmul.f32 %v698, 0.25
    %v703 = vmul.f32 %v699, 0.25
    %v704 = vmul.f32 %v677, %v700
    %v705 = vmul.f32 %v679, %v701
    %v706 = vmul.f32 %v681, %v702
    %v707 = vmul.f32 %v683, %v703
    %v709 = vsel %vm659, %v704, 0
    %711 = vmatprep.subr.mxu0 0.0
    %712 = vmatpush1.msra.mxu0 %v336
    %713 = vmatprep.subr.mxu0 0.0
    %714 = vmatpush1.msra.mxu0 0.0
    %715 = vmatprep.subr.mxu0 0.0
    %716 = vmatpush1.msra.mxu0 0.0
    %717 = vmatprep.subr.mxu0 0.0
    %718 = vmatpush1.msra.mxu0 0.0
    %719 = vmatprep.subr.mxu0 0.0
    %720 = vmatpush1.msra.mxu0 0.0
    %721 = vmatprep.subr.mxu0 0.0
    %722 = vmatpush1.msra.mxu0 0.0
    %723 = vmatprep.subr.mxu0 0.0
    %724 = vmatpush1.msra.mxu0 0.0
    %725 = vmatprep.subr.mxu0 0.0
    %726 = vmatpush1.msra.mxu0 0.0
    %727 = vmatprep.subr.mxu0 0.0
    %728 = vmatpush1.msra.mxu0 0.0
    %729 = vmatprep.subr.mxu0 0.0
    %730 = vmatpush1.msra.mxu0 0.0
    %731 = vmatprep.subr.mxu0 0.0
    %732 = vmatpush1.msra.mxu0 0.0
    %733 = vmatprep.subr.mxu0 0.0
    %734 = vmatpush1.msra.mxu0 0.0
    %735 = vmatprep.subr.mxu0 0.0
    %736 = vmatpush1.msra.mxu0 0.0
    %737 = vmatprep.subr.mxu0 0.0
    %738 = vmatpush1.msra.mxu0 0.0
    %739 = vmatprep.subr.mxu0 0.0
    %740 = vmatpush1.msra.mxu0 0.0
    %741 = vmatprep.subr.mxu0 0.0
    %742 = vmatpush1.msra.mxu0 0.0
    %743 = vmatprep.subr.mxu0 0.0
    %744 = vmatpush1.msra.mxu0 0.0
    %745 = vmatprep.subr.mxu0 0.0
    %746 = vmatpush1.msra.mxu0 0.0
    %747 = vmatprep.subr.mxu0 0.0
    %748 = vmatpush1.msra.mxu0 0.0
    %749 = vmatprep.subr.mxu0 0.0
    %750 = vmatpush1.msra.mxu0 0.0
    %751 = vmatprep.subr.mxu0 0.0
    %752 = vmatpush1.msra.mxu0 0.0
    %753 = vmatprep.subr.mxu0 0.0
    %754 = vmatpush1.msra.mxu0 0.0
    %755 = vmatprep.subr.mxu0 0.0
    %756 = vmatpush1.msra.mxu0 0.0
    %757 = vmatprep.subr.mxu0 0.0
    %758 = vmatpush1.msra.mxu0 0.0
    %759 = vmatprep.subr.mxu0 0.0
    %760 = vmatpush1.msra.mxu0 0.0
    %761 = vmatprep.subr.mxu0 0.0
    %762 = vmatpush1.msra.mxu0 0.0
    %763 = vmatprep.subr.mxu0 0.0
    %764 = vmatpush1.msra.mxu0 0.0
    %765 = vmatprep.subr.mxu0 0.0
    %766 = vmatpush1.msra.mxu0 0.0
    %767 = vmatprep.subr.mxu0 0.0
    %768 = vmatpush1.msra.mxu0 0.0
    %769 = vmatprep.subr.mxu0 0.0
    %770 = vmatpush1.msra.mxu0 0.0
    %771 = vmatprep.subr.mxu0 0.0
    %772 = vmatpush1.msra.mxu0 0.0
    %773 = vmatprep.subr.mxu0 0.0
    %774 = vmatpush1.msra.mxu0 0.0
    %775 = vmatprep.mubr.f32.mxu0 0.0
    %776 = vmatmul.mubr.f32.gmra.mrb[0].mxu0 %v709
    %v777 = vpop.f32.mrb[0].mxu0
    %v778 = vadd.f32 0.0, %v777
    %v779 = vpop.f32.mrb[0].mxu0
    %780 = vdwg.mxu0
    %v782 = vsel %vm659, %v705, 0
    %784 = vmatprep.subr.mxu0 0.0
    %785 = vmatpush1.msra.mxu0 %v341
    %786 = vmatprep.subr.mxu0 0.0
    %787 = vmatpush1.msra.mxu0 0.0
    %788 = vmatprep.subr.mxu0 0.0
    %789 = vmatpush1.msra.mxu0 0.0
    %790 = vmatprep.subr.mxu0 0.0
    %791 = vmatpush1.msra.mxu0 0.0
    %792 = vmatprep.subr.mxu0 0.0
    %793 = vmatpush1.msra.mxu0 0.0
    %794 = vmatprep.subr.mxu0 0.0
    %795 = vmatpush1.msra.mxu0 0.0
    %796 = vmatprep.subr.mxu0 0.0
    %797 = vmatpush1.msra.mxu0 0.0
    %798 = vmatprep.subr.mxu0 0.0
    %799 = vmatpush1.msra.mxu0 0.0
    %800 = vmatprep.subr.mxu0 0.0
    %801 = vmatpush1.msra.mxu0 0.0
    %802 = vmatprep.subr.mxu0 0.0
    %803 = vmatpush1.msra.mxu0 0.0
    %804 = vmatprep.subr.mxu0 0.0
    %805 = vmatpush1.msra.mxu0 0.0
    %806 = vmatprep.subr.mxu0 0.0
    %807 = vmatpush1.msra.mxu0 0.0
    %808 = vmatprep.subr.mxu0 0.0
    %809 = vmatpush1.msra.mxu0 0.0
    %810 = vmatprep.subr.mxu0 0.0
    %811 = vmatpush1.msra.mxu0 0.0
    %812 = vmatprep.subr.mxu0 0.0
    %813 = vmatpush1.msra.mxu0 0.0
    %814 = vmatprep.subr.mxu0 0.0
    %815 = vmatpush1.msra.mxu0 0.0
    %816 = vmatprep.subr.mxu0 0.0
    %817 = vmatpush1.msra.mxu0 0.0
    %818 = vmatprep.subr.mxu0 0.0
    %819 = vmatpush1.msra.mxu0 0.0
    %820 = vmatprep.subr.mxu0 0.0
    %821 = vmatpush1.msra.mxu0 0.0
    %822 = vmatprep.subr.mxu0 0.0
    %823 = vmatpush1.msra.mxu0 0.0
    %824 = vmatprep.subr.mxu0 0.0
    %825 = vmatpush1.msra.mxu0 0.0
    %826 = vmatprep.subr.mxu0 0.0
    %827 = vmatpush1.msra.mxu0 0.0
    %828 = vmatprep.subr.mxu0 0.0
    %829 = vmatpush1.msra.mxu0 0.0
    %830 = vmatprep.subr.mxu0 0.0
    %831 = vmatpush1.msra.mxu0 0.0
    %832 = vmatprep.subr.mxu0 0.0
    %833 = vmatpush1.msra.mxu0 0.0
    %834 = vmatprep.subr.mxu0 0.0
    %835 = vmatpush1.msra.mxu0 0.0
    %836 = vmatprep.subr.mxu0 0.0
    %837 = vmatpush1.msra.mxu0 0.0
    %838 = vmatprep.subr.mxu0 0.0
    %839 = vmatpush1.msra.mxu0 0.0
    %840 = vmatprep.subr.mxu0 0.0
    %841 = vmatpush1.msra.mxu0 0.0
    %842 = vmatprep.subr.mxu0 0.0
    %843 = vmatpush1.msra.mxu0 0.0
    %844 = vmatprep.subr.mxu0 0.0
    %845 = vmatpush1.msra.mxu0 0.0
    %846 = vmatprep.subr.mxu0 0.0
    %847 = vmatpush1.msra.mxu0 0.0
    %848 = vmatprep.mubr.f32.mxu0 0.0
    %849 = vmatmul.mubr.f32.gmra.mrb[0].mxu0 %v782
    %v850 = vpop.f32.mrb[0].mxu0
    %v851 = vadd.f32 0.0, %v850
    %v852 = vpop.f32.mrb[0].mxu0
    %853 = vdwg.mxu0
    %v855 = vsel %vm659, %v706, 0
    %857 = vmatprep.subr.mxu0 0.0
    %858 = vmatpush1.msra.mxu0 %v346
    %859 = vmatprep.subr.mxu0 0.0
    %860 = vmatpush1.msra.mxu0 0.0
    %861 = vmatprep.subr.mxu0 0.0
    %862 = vmatpush1.msra.mxu0 0.0
    %863 = vmatprep.subr.mxu0 0.0
    %864 = vmatpush1.msra.mxu0 0.0
    %865 = vmatprep.subr.mxu0 0.0
    %866 = vmatpush1.msra.mxu0 0.0
    %867 = vmatprep.subr.mxu0 0.0
    %868 = vmatpush1.msra.mxu0 0.0
    %869 = vmatprep.subr.mxu0 0.0
    %870 = vmatpush1.msra.mxu0 0.0
    %871 = vmatprep.subr.mxu0 0.0
    %872 = vmatpush1.msra.mxu0 0.0
    %873 = vmatprep.subr.mxu0 0.0
    %874 = vmatpush1.msra.mxu0 0.0
    %875 = vmatprep.subr.mxu0 0.0
    %876 = vmatpush1.msra.mxu0 0.0
    %877 = vmatprep.subr.mxu0 0.0
    %878 = vmatpush1.msra.mxu0 0.0
    %879 = vmatprep.subr.mxu0 0.0
    %880 = vmatpush1.msra.mxu0 0.0
    %881 = vmatprep.subr.mxu0 0.0
    %882 = vmatpush1.msra.mxu0 0.0
    %883 = vmatprep.subr.mxu0 0.0
    %884 = vmatpush1.msra.mxu0 0.0
    %885 = vmatprep.subr.mxu0 0.0
    %886 = vmatpush1.msra.mxu0 0.0
    %887 = vmatprep.subr.mxu0 0.0
    %888 = vmatpush1.msra.mxu0 0.0
    %889 = vmatprep.subr.mxu0 0.0
    %890 = vmatpush1.msra.mxu0 0.0
    %891 = vmatprep.subr.mxu0 0.0
    %892 = vmatpush1.msra.mxu0 0.0
    %893 = vmatprep.subr.mxu0 0.0
    %894 = vmatpush1.msra.mxu0 0.0
    %895 = vmatprep.subr.mxu0 0.0
    %896 = vmatpush1.msra.mxu0 0.0
    %897 = vmatprep.subr.mxu0 0.0
    %898 = vmatpush1.msra.mxu0 0.0
    %899 = vmatprep.subr.mxu0 0.0
    %900 = vmatpush1.msra.mxu0 0.0
    %901 = vmatprep.subr.mxu0 0.0
    %902 = vmatpush1.msra.mxu0 0.0
    %903 = vmatprep.subr.mxu0 0.0
    %904 = vmatpush1.msra.mxu0 0.0
    %905 = vmatprep.subr.mxu0 0.0
    %906 = vmatpush1.msra.mxu0 0.0
    %907 = vmatprep.subr.mxu0 0.0
    %908 = vmatpush1.msra.mxu0 0.0
    %909 = vmatprep.subr.mxu0 0.0
    %910 = vmatpush1.msra.mxu0 0.0
    %911 = vmatprep.subr.mxu0 0.0
    %912 = vmatpush1.msra.mxu0 0.0
    %913 = vmatprep.subr.mxu0 0.0
    %914 = vmatpush1.msra.mxu0 0.0
    %915 = vmatprep.subr.mxu0 0.0
    %916 = vmatpush1.msra.mxu0 0.0
    %917 = vmatprep.subr.mxu0 0.0
    %918 = vmatpush1.msra.mxu0 0.0
    %919 = vmatprep.subr.mxu0 0.0
    %920 = vmatpush1.msra.mxu0 0.0
    %921 = vmatprep.mubr.f32.mxu0 0.0
    %922 = vmatmul.mubr.f32.gmra.mrb[0].mxu0 %v855
    %v923 = vpop.f32.mrb[0].mxu0
    %v924 = vadd.f32 0.0, %v923
    %v925 = vpop.f32.mrb[0].mxu0
    %926 = vdwg.mxu0
    %v928 = vsel %vm659, %v707, 0
    %930 = vmatprep.subr.mxu0 0.0
    %931 = vmatpush1.msra.mxu0 %v351
    %932 = vmatprep.subr.mxu0 0.0
    %933 = vmatpush1.msra.mxu0 0.0
    %934 = vmatprep.subr.mxu0 0.0
    %935 = vmatpush1.msra.mxu0 0.0
    %936 = vmatprep.subr.mxu0 0.0
    %937 = vmatpush1.msra.mxu0 0.0
    %938 = vmatprep.subr.mxu0 0.0
    %939 = vmatpush1.msra.mxu0 0.0
    %940 = vmatprep.subr.mxu0 0.0
    %941 = vmatpush1.msra.mxu0 0.0
    %942 = vmatprep.subr.mxu0 0.0
    %943 = vmatpush1.msra.mxu0 0.0
    %944 = vmatprep.subr.mxu0 0.0
    %945 = vmatpush1.msra.mxu0 0.0
    %946 = vmatprep.subr.mxu0 0.0
    %947 = vmatpush1.msra.mxu0 0.0
    %948 = vmatprep.subr.mxu0 0.0
    %949 = vmatpush1.msra.mxu0 0.0
    %950 = vmatprep.subr.mxu0 0.0
    %951 = vmatpush1.msra.mxu0 0.0
    %952 = vmatprep.subr.mxu0 0.0
    %953 = vmatpush1.msra.mxu0 0.0
    %954 = vmatprep.subr.mxu0 0.0
    %955 = vmatpush1.msra.mxu0 0.0
    %956 = vmatprep.subr.mxu0 0.0
    %957 = vmatpush1.msra.mxu0 0.0
    %958 = vmatprep.subr.mxu0 0.0
    %959 = vmatpush1.msra.mxu0 0.0
    %960 = vmatprep.subr.mxu0 0.0
    %961 = vmatpush1.msra.mxu0 0.0
    %962 = vmatprep.subr.mxu0 0.0
    %963 = vmatpush1.msra.mxu0 0.0
    %964 = vmatprep.subr.mxu0 0.0
    %965 = vmatpush1.msra.mxu0 0.0
    %966 = vmatprep.subr.mxu0 0.0
    %967 = vmatpush1.msra.mxu0 0.0
    %968 = vmatprep.subr.mxu0 0.0
    %969 = vmatpush1.msra.mxu0 0.0
    %970 = vmatprep.subr.mxu0 0.0
    %971 = vmatpush1.msra.mxu0 0.0
    %972 = vmatprep.subr.mxu0 0.0
    %973 = vmatpush1.msra.mxu0 0.0
    %974 = vmatprep.subr.mxu0 0.0
    %975 = vmatpush1.msra.mxu0 0.0
    %976 = vmatprep.subr.mxu0 0.0
    %977 = vmatpush1.msra.mxu0 0.0
    %978 = vmatprep.subr.mxu0 0.0
    %979 = vmatpush1.msra.mxu0 0.0
    %980 = vmatprep.subr.mxu0 0.0
    %981 = vmatpush1.msra.mxu0 0.0
    %982 = vmatprep.subr.mxu0 0.0
    %983 = vmatpush1.msra.mxu0 0.0
    %984 = vmatprep.subr.mxu0 0.0
    %985 = vmatpush1.msra.mxu0 0.0
    %986 = vmatprep.subr.mxu0 0.0
    %987 = vmatpush1.msra.mxu0 0.0
    %988 = vmatprep.subr.mxu0 0.0
    %989 = vmatpush1.msra.mxu0 0.0
    %990 = vmatprep.subr.mxu0 0.0
    %991 = vmatpush1.msra.mxu0 0.0
    %992 = vmatprep.subr.mxu0 0.0
    %993 = vmatpush1.msra.mxu0 0.0
    %994 = vmatprep.mubr.f32.mxu0 0.0
    %995 = vmatmul.mubr.f32.gmra.mrb[0].mxu0 %v928
    %v996 = vpop.f32.mrb[0].mxu0
    %v997 = vadd.f32 0.0, %v996
    %v998 = vpop.f32.mrb[0].mxu0
    %999 = vdwg.mxu0
    %1000 = vst.msk [vmem:[#allocation2] sm:$0xff] %vm60, %v778
    %1001 = vst.msk [vmem:[#allocation2 + $0x8] sm:$0xff] %vm60, %v851
    %1002 = vst.msk [vmem:[#allocation2 + $0x10] sm:$0xff] %vm60, %v924
    %1003 = vst.msk [vmem:[#allocation2 + $0x18] sm:$0xff] %vm60, %v997
    %v1004 = vadd.f32 %v778, %v37
    %v1005 = vadd.f32 %v851, %v38
    %v1006 = vadd.f32 %v924, %v39
    %v1007 = vadd.f32 %v997, %v40
    %1008 = vst.msk [vmem:[#allocation4] sm:$0xff] %vm60, %v1004
    %1009 = vst.msk [vmem:[#allocation4 + $0x8] sm:$0xff] %vm60, %v1005
    %1010 = vst.msk [vmem:[#allocation4 + $0x10] sm:$0xff] %vm60, %v1006
    %1011 = vst.msk [vmem:[#allocation4 + $0x18] sm:$0xff] %vm60, %v1007
    // Predicated region
    $region34: #{tpu_custom_call.1} parent=1 // pred_check
      _
    $region35: #{tpu_custom_call.1} parent=1 // pred_check_branch
      %1013 = sbr.rel (0) target = $region37
    $region36: #{tpu_custom_call.1} parent=1 // pred_region
      %s1015 = ssub.s32 512, 512
      %1016 = vsyncadd [#allocation3], %s1015
      %s1017 = sshll.u32 [#allocation2], 4
      %s1018 = int_to_ptr.vmem [resolvable:$true] %s1017
      %1023 = dma.vmem_to_hbm [thread:$0]  %s1018, 512, %s8, [#allocation3], 128, 128, 8
    $region37: #{tpu_custom_call.1} parent=1 // pred_fallthru
      _
    // Predicated region
    $region38: #{tpu_custom_call.1} parent=1 // pred_check
      _
    $region39: #{tpu_custom_call.1} parent=1 // pred_check_branch
      %1025 = sbr.rel (0) target = $region41
    $region40: #{tpu_custom_call.1} parent=1 // pred_region
      %s1027 = ssub.s32 512, 512
      %1028 = vsyncadd [#allocation5], %s1027
      %s1029 = sshll.u32 [#allocation4], 4
      %s1030 = int_to_ptr.vmem [resolvable:$true] %s1029
      %1035 = dma.vmem_to_hbm [thread:$0]  %s1030, 512, %s9, [#allocation5], 128, 128, 8
    $region41: #{tpu_custom_call.1} parent=1 // pred_fallthru
      _
    // Predicated region
    $region42: #{tpu_custom_call.1} parent=1 // pred_check
      _
    $region43: #{tpu_custom_call.1} parent=1 // pred_check_branch
      %1037 = sbr.rel (0) target = $region45
    $region44: #{tpu_custom_call.1} parent=1 // pred_region
      %1038 = dma.done [#allocation3], 512
    $region45: #{tpu_custom_call.1} parent=1 // pred_fallthru
      _
    // Predicated region
    $region46: #{tpu_custom_call.1} parent=1 // pred_check
      _
    $region47: #{tpu_custom_call.1} parent=1 // pred_check_branch
      %1040 = sbr.rel (0) target = $region49
    $region48: #{tpu_custom_call.1} parent=1 // pred_region
      %1041 = dma.done [#allocation5], 512
    $region49: #{tpu_custom_call.1} parent=1 // pred_fallthru
      _
    %1042 = vsyncpa [#allocation3], 1
    %1043 = vsyncpa [#allocation5], 1

</llo_original>
